<compile_context>
chip_gen: v5e
topology: v5e:2x2
jax: 0.10.0
libtpu: 0.0.40
codegen_flags: <defaults>
</compile_context>

<pallas_src>
import jax
import jax.numpy as jnp
from jax import lax
from jax.experimental import pallas as pl
from jax.experimental.pallas import tpu as pltpu

EPS = 1e-5

_VMEM_LIMIT = None


def _vmem_limit_bytes():
    """Generation-aware scoped-VMEM cap (v5e/v6e ~96 MiB, v7x ~48 MiB)."""
    global _VMEM_LIMIT
    if _VMEM_LIMIT is None:
        try:
            cap = int(pltpu.get_tpu_info().vmem_capacity_bytes)
        except Exception:
            cap = 64 * 1024 * 1024
        _VMEM_LIMIT = max(32 * 1024 * 1024,
                          min(96 * 1024 * 1024, (cap * 3) // 4))
    return _VMEM_LIMIT


def _compiler_params():
    return pltpu.CompilerParams(
        dimension_semantics=("parallel",),
        vmem_limit_bytes=_vmem_limit_bytes(),
    )


def _pick_samples_per_tile(n, length):
    """Samples per grid tile: ~512 lanes of work per step, but keep >=2 tiles
    (when N allows) so dual-TC chips (v7x) can shard the parallel grid."""
    target = max(1, 512 // max(length, 1))
    if n >= 2:
        target = min(target, n // 2)
    target = max(1, min(target, n))
    for d in range(target, 0, -1):
        if n % d == 0:
            return d
    return 1


def _lane_stats(s_cl, q_cl):
    """(C, L) f32 partial sums / sums-of-squares -> (2, C) lane-dense stats."""
    ones_row = jnp.ones((1, s_cl.shape[1]), jnp.float32)
    s = jnp.einsum("kl,cl->kc", ones_row, s_cl,
                   preferred_element_type=jnp.float32)      # (1, C)
    q = jnp.einsum("kl,cl->kc", ones_row, q_cl,
                   preferred_element_type=jnp.float32)      # (1, C)
    return jnp.concatenate([s, q], axis=0)                  # (2, C)


# ---- pass 1: conv1 (1x1) + BN1 partial batch statistics ----------------------
def _conv1_kernel(x_ref, w_ref, h_ref, stat_ref):
    w = w_ref[...]                                          # (P, Cin) bf16
    s_cl = None
    q_cl = None
    for b in range(x_ref.shape[0]):                         # static unrolled loop
        xb = x_ref[b].astype(jnp.bfloat16)                  # (Cin, L)
        y = jnp.dot(w, xb, preferred_element_type=jnp.float32)   # (P, L) f32
        h_ref[b] = y.astype(h_ref.dtype)
        s_cl = y if s_cl is None else s_cl + y
        q_cl = y * y if q_cl is None else q_cl + y * y
    stat_ref[...] = _lane_stats(s_cl, q_cl)


# ---- pass 2: BN1 + ReLU -> conv2 (k=3, p=1) via 3 tap dots + BN2 stats -------
def _conv2_kernel(h1_ref, w_ref, scale_ref, shift_ref, h_ref, stat_ref):
    scale = scale_ref[...]                                  # (P, 1) f32
    shift = shift_ref[...]
    w_prev = w_ref[0]                                       # tap k=0 -> x[l-1]
    w_ctr = w_ref[1]                                        # tap k=1 -> x[l]
    w_next = w_ref[2]                                       # tap k=2 -> x[l+1]
    length = h1_ref.shape[2]
    s_cl = None
    q_cl = None
    for b in range(h1_ref.shape[0]):
        h = jnp.maximum(h1_ref[b].astype(jnp.float32) * scale + shift, 0.0)
        lane = lax.broadcasted_iota(jnp.int32, h.shape, 1)
        h_prev = jnp.where(lane == 0, 0.0, pltpu.roll(h, 1, 1))           # x[l-1]
        h_next = jnp.where(lane == length - 1, 0.0,
                           pltpu.roll(h, length - 1, 1))                  # x[l+1]
        y = jnp.dot(w_prev, h_prev.astype(jnp.bfloat16),
                    preferred_element_type=jnp.float32)
        y = y + jnp.dot(w_ctr, h.astype(jnp.bfloat16),
                        preferred_element_type=jnp.float32)
        y = y + jnp.dot(w_next, h_next.astype(jnp.bfloat16),
                        preferred_element_type=jnp.float32)               # (P, L)
        h_ref[b] = y.astype(h_ref.dtype)
        s_cl = y if s_cl is None else s_cl + y
        q_cl = y * y if q_cl is None else q_cl + y * y
    stat_ref[...] = _lane_stats(s_cl, q_cl)


# ---- pass 3: BN2 + ReLU -> conv3 (1x1) + BN3 stats ---------------------------
def _conv3_kernel(h2_ref, w_ref, scale_ref, shift_ref, h_ref, stat_ref):
    scale = scale_ref[...]                                  # (P, 1) f32
    shift = shift_ref[...]
    w = w_ref[...]                                          # (4P, P) bf16
    s_cl = None
    q_cl = None
    for b in range(h2_ref.shape[0]):
        h = jnp.maximum(h2_ref[b].astype(jnp.float32) * scale + shift, 0.0)
        y = jnp.dot(w, h.astype(jnp.bfloat16),
                    preferred_element_type=jnp.float32)     # (4P, L)
        h_ref[b] = y.astype(h_ref.dtype)
        s_cl = y if s_cl is None else s_cl + y
        q_cl = y * y if q_cl is None else q_cl + y * y
    stat_ref[...] = _lane_stats(s_cl, q_cl)


# ---- pass 4: BN3 + identity residual + ReLU ----------------------------------
def _residual_kernel(h3_ref, x_ref, scale_ref, shift_ref, o_ref):
    scale = scale_ref[...]                                  # (4P, 1) f32
    shift = shift_ref[...]
    for b in range(x_ref.shape[0]):
        h = h3_ref[b].astype(jnp.float32) * scale + shift
        o_ref[b] = jnp.maximum(h + x_ref[b].astype(jnp.float32), 0.0)


# ---- wrapper -----------------------------------------------------------------
def _fold_bn(partial_stats, gamma, beta, count):
    """(Ntiles, 2, C) partial [sum; sumsq] -> per-channel (scale, shift) (C,1)."""
    stats = jnp.sum(partial_stats, axis=0)                  # (2, C)
    mean = stats[0] / count
    var = stats[1] / count - mean * mean                    # biased (training) var
    scale = gamma * lax.rsqrt(var + EPS)
    shift = beta - mean * scale
    return scale[:, None], shift[:, None]


@jax.jit
def bottleneck_forward(x_ncl, params):
    """x_ncl: (N, 4*planes, L) torch NCL layout. Returns (N, 4*planes, L)."""
    w1, w2, w3, g1, b1, g2, b2, g3, b3 = params
    n, cin, length = x_ncl.shape
    p = w1.shape[0]
    cout = w3.shape[0]
    spt = _pick_samples_per_tile(n, length)
    ntiles = n // spt
    count = jnp.float32(n * length)
    cp = _compiler_params()

    def act_spec(c):
        # spt whole samples per grid step; lanes carry L (lane-dense stores).
        return pl.BlockSpec((spt, c, length), lambda j: (j, 0, 0))

    def stat_spec(c):
        # per-tile (2, C) partial stats with channels on the lane axis.
        return pl.BlockSpec((None, 2, c), lambda j: (j, 0, 0))

    def full_spec(shape):
        # small resident operand (weights / folded BN params).
        return pl.BlockSpec(shape, lambda j: (0,) * len(shape))

    # pass 1: conv1 + BN1 stats
    h1, st1 = pl.pallas_call(
        _conv1_kernel,
        grid=(ntiles,),
        in_specs=[act_spec(cin), full_spec(w1.shape)],
        out_specs=[act_spec(p), stat_spec(p)],
        out_shape=[jax.ShapeDtypeStruct((n, p, length), jnp.bfloat16),
                   jax.ShapeDtypeStruct((ntiles, 2, p), jnp.float32)],
        compiler_params=cp,
    )(x_ncl, w1)
    scale1, shift1 = _fold_bn(st1, g1, b1, count)

    # pass 2: BN1+ReLU -> conv2 + BN2 stats
    h2, st2 = pl.pallas_call(
        _conv2_kernel,
        grid=(ntiles,),
        in_specs=[act_spec(p), full_spec(w2.shape),
                  full_spec((p, 1)), full_spec((p, 1))],
        out_specs=[act_spec(p), stat_spec(p)],
        out_shape=[jax.ShapeDtypeStruct((n, p, length), jnp.bfloat16),
                   jax.ShapeDtypeStruct((ntiles, 2, p), jnp.float32)],
        compiler_params=cp,
    )(h1, w2, scale1, shift1)
    scale2, shift2 = _fold_bn(st2, g2, b2, count)

    # pass 3: BN2+ReLU -> conv3 + BN3 stats
    h3, st3 = pl.pallas_call(
        _conv3_kernel,
        grid=(ntiles,),
        in_specs=[act_spec(p), full_spec(w3.shape),
                  full_spec((p, 1)), full_spec((p, 1))],
        out_specs=[act_spec(cout), stat_spec(cout)],
        out_shape=[jax.ShapeDtypeStruct((n, cout, length), jnp.bfloat16),
                   jax.ShapeDtypeStruct((ntiles, 2, cout), jnp.float32)],
        compiler_params=cp,
    )(h2, w3, scale2, shift2)
    scale3, shift3 = _fold_bn(st3, g3, b3, count)

    # pass 4: BN3 + identity residual + ReLU
    out = pl.pallas_call(
        _residual_kernel,
        grid=(ntiles,),
        in_specs=[act_spec(cout), act_spec(cin),
                  full_spec((cout, 1)), full_spec((cout, 1))],
        out_specs=act_spec(cout),
        out_shape=jax.ShapeDtypeStruct((n, cout, length), jnp.float32),
        compiler_params=cp,
    )(h3, x_ncl, scale3, shift3)
    return out


# ---------------- pure-JAX reference (torch NCL layout) -----------------------
def _bn_ref(y_ncl, gamma, beta):
    mean = jnp.mean(y_ncl, axis=(0, 2), keepdims=True)
    var = jnp.mean(jnp.square(y_ncl - mean), axis=(0, 2), keepdims=True)
    return (y_ncl - mean) * lax.rsqrt(var + EPS) \
        * gamma[None, :, None] + beta[None, :, None]


def _conv1d_ref(x_ncl, w_oik, pad):
    return lax.conv_general_dilated(
        x_ncl, w_oik, window_strides=(1,), padding=[(pad, pad)],
        dimension_numbers=("NCH", "OIH", "NCH"))


def bottleneck_ref(x_ncl, torch_params):
    w1, w2, w3, g1, b1, g2, b2, g3, b3 = torch_params
    out = jnp.maximum(_bn_ref(_conv1d_ref(x_ncl, w1, 0), g1, b1), 0.0)
    out = jnp.maximum(_bn_ref(_conv1d_ref(out, w2, 1), g2, b2), 0.0)
    out = _bn_ref(_conv1d_ref(out, w3, 0), g3, b3)
    return jnp.maximum(out + x_ncl, 0.0)


# ---------------- parameter construction --------------------------------------
def make_params(key, inplanes, planes):
    ks = jax.random.split(key, 9)
    # torch-layout conv weights (O, I, K), kaiming-ish scaling
    w1_t = jax.random.normal(ks[0], (planes, inplanes, 1), jnp.float32) \
        * (2.0 / inplanes) ** 0.5
    w2_t = jax.random.normal(ks[1], (planes, planes, 3), jnp.float32) \
        * (2.0 / (3 * planes)) ** 0.5
    w3_t = jax.random.normal(ks[2], (4 * planes, planes, 1), jnp.float32) \
        * (2.0 / planes) ** 0.5
    g1 = 1.0 + 0.1 * jax.random.normal(ks[3], (planes,), jnp.float32)
    b1 = 0.1 * jax.random.normal(ks[4], (planes,), jnp.float32)
    g2 = 1.0 + 0.1 * jax.random.normal(ks[5], (planes,), jnp.float32)
    b2 = 0.1 * jax.random.normal(ks[6], (planes,), jnp.float32)
    g3 = 1.0 + 0.1 * jax.random.normal(ks[7], (4 * planes,), jnp.float32)
    b3 = 0.1 * jax.random.normal(ks[8], (4 * planes,), jnp.float32)
    torch_params = (w1_t, w2_t, w3_t, g1, b1, g2, b2, g3, b3)

    # kernel layout: weight-stationary (Cout, Cin) matrices, bf16 MXU operands.
    w1_k = w1_t[:, :, 0].astype(jnp.bfloat16)                      # (P, Cin)
    # (3, P, P) with [k, o, i] = w2[o, i, k]  (taps: prev / center / next)
    w2_k = jnp.transpose(w2_t, (2, 0, 1)).astype(jnp.bfloat16)
    w3_k = w3_t[:, :, 0].astype(jnp.bfloat16)                      # (4P, P)
    kern_params = (w1_k, w2_k, w3_k, g1, b1, g2, b2, g3, b3)
    return kern_params, torch_params


if __name__ == "__main__":
    planes = 8
    inplanes = planes * 4      # identity residual requires inplanes == 4*planes
    N, L = 4, 128

    key = jax.random.PRNGKey(0)
    kx, kp = jax.random.split(key)
    x = jax.random.normal(kx, (N, inplanes, L), jnp.float32)   # torch NCL layout

    kern_params, torch_params = make_params(kp, inplanes, planes)

    out = jax.block_until_ready(bottleneck_forward(x, kern_params))
    ref = bottleneck_ref(x, torch_params)

    assert out.shape == (N, 4 * planes, L)
    max_err = float(jnp.max(jnp.abs(out - ref)))
    mean_err = float(jnp.mean(jnp.abs(out - ref)))
    # bf16 matmul operands + bf16 intermediate storage (f32 accumulation and
    # statistics) -> loosened elementwise tolerance, plus a tight statistical
    # check that still catches semantic bugs.
    assert jnp.allclose(out, ref, atol=2e-1, rtol=2e-1), \
        f"max abs err {max_err}"
    assert mean_err < 3e-2, f"mean abs err {mean_err}"

    print("KERNEL_OK")
</pallas_src>

<mosaic_0001>
module attributes {stable_mosaic.version = 11 : i64} {
  func.func @_conv1_kernel(%arg0: i32, %arg1: memref<2x32x128xf32, #tpu.memory_space<vmem>>, %arg2: memref<8x32xbf16, #tpu.memory_space<vmem>>, %arg3: memref<2x8x128xbf16, #tpu.memory_space<vmem>>, %arg4: memref<1x2x8xf32, #tpu.memory_space<vmem>>) attributes {dimension_semantics = [#tpu.dimension_semantics<parallel>], iteration_bounds = array<i64: 2>, scalar_prefetch = 0 : i64, scratch_operands = 0 : i64, tpu.core_type = #tpu.core_type<tc>, window_params = [{transform_indices = @transform_0, window_bounds = array<i64: 2, 32, 128>}, {pipeline_mode = #tpu.pipeline_mode<synchronous>, transform_indices = @transform_1, window_bounds = array<i64: 8, 32>}, {transform_indices = @transform_2, window_bounds = array<i64: 2, 8, 128>}, {transform_indices = @transform_3, window_bounds = array<i64: 1, 2, 8>}]} {
    %c0 = arith.constant 0 : index
    %c0_0 = arith.constant 0 : index
    %0 = vector.load %arg2[%c0, %c0_0] : memref<8x32xbf16, #tpu.memory_space<vmem>>, vector<8x32xbf16>
    %c0_1 = arith.constant 0 : index
    %c0_2 = arith.constant 0 : index
    %c0_3 = arith.constant 0 : index
    %1 = vector.load %arg1[%c0_1, %c0_2, %c0_3] : memref<2x32x128xf32, #tpu.memory_space<vmem>>, vector<1x32x128xf32>
    %2 = vector.shape_cast %1 : vector<1x32x128xf32> to vector<32x128xf32>
    %3 = arith.truncf %2 : vector<32x128xf32> to vector<32x128xbf16>
    %cst = arith.constant dense<0.000000e+00> : vector<8x128xf32>
    %4 = tpu.matmul %0, %3, %cst {dimension_numbers = #tpu.dot_dimension_numbers<[1], [0], [0], [1], [0, 0, 1, 1], [], []>} : vector<8x32xbf16>, vector<32x128xbf16>, vector<8x128xf32> -> vector<8x128xf32>
    %5 = arith.truncf %4 : vector<8x128xf32> to vector<8x128xbf16>
    %c0_4 = arith.constant 0 : index
    %c0_5 = arith.constant 0 : index
    %c0_6 = arith.constant 0 : index
    %6 = vector.load %arg3[%c0_4, %c0_5, %c0_6] : memref<2x8x128xbf16, #tpu.memory_space<vmem>>, vector<1x8x128xbf16>
    %7 = vector.shape_cast %6 : vector<1x8x128xbf16> to vector<8x128xbf16>
    %8 = vector.shape_cast %5 : vector<8x128xbf16> to vector<1x8x128xbf16>
    tpu.vector_store %arg3[%c0_4, %c0_5, %c0_6], %8 {strides = array<i32>} : memref<2x8x128xbf16, #tpu.memory_space<vmem>>, vector<1x8x128xbf16>,
    %9 = arith.mulf %4, %4 : vector<8x128xf32>
    %c1 = arith.constant 1 : index
    %c0_7 = arith.constant 0 : index
    %c0_8 = arith.constant 0 : index
    %10 = vector.load %arg1[%c1, %c0_7, %c0_8] : memref<2x32x128xf32, #tpu.memory_space<vmem>>, vector<1x32x128xf32>
    %11 = vector.shape_cast %10 : vector<1x32x128xf32> to vector<32x128xf32>
    %12 = arith.truncf %11 : vector<32x128xf32> to vector<32x128xbf16>
    %cst_9 = arith.constant dense<0.000000e+00> : vector<8x128xf32>
    %13 = tpu.matmul %0, %12, %cst_9 {dimension_numbers = #tpu.dot_dimension_numbers<[1], [0], [0], [1], [0, 0, 1, 1], [], []>} : vector<8x32xbf16>, vector<32x128xbf16>, vector<8x128xf32> -> vector<8x128xf32>
    %14 = arith.truncf %13 : vector<8x128xf32> to vector<8x128xbf16>
    %c1_10 = arith.constant 1 : index
    %c0_11 = arith.constant 0 : index
    %c0_12 = arith.constant 0 : index
    %15 = vector.load %arg3[%c1_10, %c0_11, %c0_12] : memref<2x8x128xbf16, #tpu.memory_space<vmem>>, vector<1x8x128xbf16>
    %16 = vector.shape_cast %15 : vector<1x8x128xbf16> to vector<8x128xbf16>
    %17 = vector.shape_cast %14 : vector<8x128xbf16> to vector<1x8x128xbf16>
    tpu.vector_store %arg3[%c1_10, %c0_11, %c0_12], %17 {strides = array<i32>} : memref<2x8x128xbf16, #tpu.memory_space<vmem>>, vector<1x8x128xbf16>,
    %18 = arith.addf %4, %13 : vector<8x128xf32>
    %19 = arith.mulf %13, %13 : vector<8x128xf32>
    %20 = arith.addf %9, %19 : vector<8x128xf32>
    %cst_13 = arith.constant 1.000000e+00 : f32
    %21 = vector.broadcast %cst_13 : f32 to vector<1x128xf32>
    "tpu.trace_start"() <{level = 10 : i32, message = "kl,cl->kc"}> : () -> ()
    %cst_14 = arith.constant dense<0.000000e+00> : vector<1x8xf32>
    %22 = tpu.matmul %21, %18, %cst_14 {dimension_numbers = #tpu.dot_dimension_numbers<[1], [1], [0], [0], [0, 0, 1, 0], [], []>} : vector<1x128xf32>, vector<8x128xf32>, vector<1x8xf32> -> vector<1x8xf32>
    %cst_15 = arith.constant dense<0.000000e+00> : vector<1x8xf32>
    %23 = tpu.matmul %21, %20, %cst_15 {dimension_numbers = #tpu.dot_dimension_numbers<[1], [1], [0], [0], [0, 0, 1, 0], [], []>} : vector<1x128xf32>, vector<8x128xf32>, vector<1x8xf32> -> vector<1x8xf32>
    "tpu.trace_stop"() : () -> ()
    %24 = tpu.concatenate %22, %23 in 0 : vector<1x8xf32>, vector<1x8xf32> -> vector<2x8xf32>
    %c0_16 = arith.constant 0 : index
    %c0_17 = arith.constant 0 : index
    %c0_18 = arith.constant 0 : index
    %25 = vector.load %arg4[%c0_16, %c0_17, %c0_18] : memref<1x2x8xf32, #tpu.memory_space<vmem>>, vector<1x2x8xf32>
    %26 = vector.shape_cast %25 : vector<1x2x8xf32> to vector<2x8xf32>
    %27 = vector.shape_cast %24 : vector<2x8xf32> to vector<1x2x8xf32>
    tpu.vector_store %arg4[%c0_16, %c0_17, %c0_18], %27 {strides = array<i32>} : memref<1x2x8xf32, #tpu.memory_space<vmem>>, vector<1x2x8xf32>,
    return
  }
  func.func @transform_0(%arg0: i32) -> (i32, i32, i32) {
    %c0_i32 = arith.constant 0 : i32
    %c0_i32_0 = arith.constant 0 : i32
    %c0_i32_1 = arith.constant 0 : i32
    return %arg0, %c0_i32, %c0_i32_0 : i32, i32, i32
  }
  func.func @transform_1(%arg0: i32) -> (i32, i32) {
    %c0_i32 = arith.constant 0 : i32
    %c0_i32_0 = arith.constant 0 : i32
    %c0_i32_1 = arith.constant 0 : i32
    return %c0_i32, %c0_i32_0 : i32, i32
  }
  func.func @transform_2(%arg0: i32) -> (i32, i32, i32) {
    %c0_i32 = arith.constant 0 : i32
    %c0_i32_0 = arith.constant 0 : i32
    %c0_i32_1 = arith.constant 0 : i32
    return %arg0, %c0_i32, %c0_i32_0 : i32, i32, i32
  }
  func.func @transform_3(%arg0: i32) -> (i32, i32, i32) {
    %c0_i32 = arith.constant 0 : i32
    %c0_i32_0 = arith.constant 0 : i32
    %c0_i32_1 = arith.constant 0 : i32
    return %arg0, %c0_i32, %c0_i32_0 : i32, i32, i32
  }
}

module attributes {stable_mosaic.version = 11 : i64} {
  func.func @_residual_kernel(%arg0: i32, %arg1: memref<2x32x128xbf16, #tpu.memory_space<vmem>>, %arg2: memref<2x32x128xf32, #tpu.memory_space<vmem>>, %arg3: memref<32x1xf32, #tpu.memory_space<vmem>>, %arg4: memref<32x1xf32, #tpu.memory_space<vmem>>, %arg5: memref<2x32x128xf32, #tpu.memory_space<vmem>>) attributes {dimension_semantics = [#tpu.dimension_semantics<parallel>], iteration_bounds = array<i64: 2>, scalar_prefetch = 0 : i64, scratch_operands = 0 : i64, tpu.core_type = #tpu.core_type<tc>, window_params = [{transform_indices = @transform_0, window_bounds = array<i64: 2, 32, 128>}, {transform_indices = @transform_1, window_bounds = array<i64: 2, 32, 128>}, {pipeline_mode = #tpu.pipeline_mode<synchronous>, transform_indices = @transform_2, window_bounds = array<i64: 32, 1>}, {pipeline_mode = #tpu.pipeline_mode<synchronous>, transform_indices = @transform_3, window_bounds = array<i64: 32, 1>}, {transform_indices = @transform_4, window_bounds = array<i64: 2, 32, 128>}]} {
    %c0 = arith.constant 0 : index
    %c0_0 = arith.constant 0 : index
    %0 = vector.load %arg3[%c0, %c0_0] : memref<32x1xf32, #tpu.memory_space<vmem>>, vector<32x1xf32>
    %c0_1 = arith.constant 0 : index
    %c0_2 = arith.constant 0 : index
    %1 = vector.load %arg4[%c0_1, %c0_2] : memref<32x1xf32, #tpu.memory_space<vmem>>, vector<32x1xf32>
    %c0_3 = arith.constant 0 : index
    %c0_4 = arith.constant 0 : index
    %c0_5 = arith.constant 0 : index
    %2 = vector.load %arg1[%c0_3, %c0_4, %c0_5] : memref<2x32x128xbf16, #tpu.memory_space<vmem>>, vector<1x32x128xbf16>
    %3 = vector.shape_cast %2 : vector<1x32x128xbf16> to vector<32x128xbf16>
    %4 = arith.extf %3 : vector<32x128xbf16> to vector<32x128xf32>
    %5 = vector.broadcast %0 : vector<32x1xf32> to vector<32x128xf32>
    %6 = arith.mulf %4, %5 : vector<32x128xf32>
    %7 = vector.broadcast %1 : vector<32x1xf32> to vector<32x128xf32>
    %8 = arith.addf %6, %7 : vector<32x128xf32>
    %c0_6 = arith.constant 0 : index
    %c0_7 = arith.constant 0 : index
    %c0_8 = arith.constant 0 : index
    %9 = vector.load %arg2[%c0_6, %c0_7, %c0_8] : memref<2x32x128xf32, #tpu.memory_space<vmem>>, vector<1x32x128xf32>
    %10 = vector.shape_cast %9 : vector<1x32x128xf32> to vector<32x128xf32>
    %11 = arith.addf %8, %10 : vector<32x128xf32>
    %cst = arith.constant 0.000000e+00 : f32
    %12 = vector.broadcast %cst : f32 to vector<32x128xf32>
    %13 = arith.maximumf %11, %12 : vector<32x128xf32>
    %c0_9 = arith.constant 0 : index
    %c0_10 = arith.constant 0 : index
    %c0_11 = arith.constant 0 : index
    %14 = vector.load %arg5[%c0_9, %c0_10, %c0_11] : memref<2x32x128xf32, #tpu.memory_space<vmem>>, vector<1x32x128xf32>
    %15 = vector.shape_cast %14 : vector<1x32x128xf32> to vector<32x128xf32>
    %16 = vector.shape_cast %13 : vector<32x128xf32> to vector<1x32x128xf32>
    tpu.vector_store %arg5[%c0_9, %c0_10, %c0_11], %16 {strides = array<i32>} : memref<2x32x128xf32, #tpu.memory_space<vmem>>, vector<1x32x128xf32>,
    %c1 = arith.constant 1 : index
    %c0_12 = arith.constant 0 : index
    %c0_13 = arith.constant 0 : index
    %17 = vector.load %arg1[%c1, %c0_12, %c0_13] : memref<2x32x128xbf16, #tpu.memory_space<vmem>>, vector<1x32x128xbf16>
    %18 = vector.shape_cast %17 : vector<1x32x128xbf16> to vector<32x128xbf16>
    %19 = arith.extf %18 : vector<32x128xbf16> to vector<32x128xf32>
    %20 = vector.broadcast %0 : vector<32x1xf32> to vector<32x128xf32>
    %21 = arith.mulf %19, %20 : vector<32x128xf32>
    %22 = vector.broadcast %1 : vector<32x1xf32> to vector<32x128xf32>
    %23 = arith.addf %21, %22 : vector<32x128xf32>
    %c1_14 = arith.constant 1 : index
    %c0_15 = arith.constant 0 : index
    %c0_16 = arith.constant 0 : index
    %24 = vector.load %arg2[%c1_14, %c0_15, %c0_16] : memref<2x32x128xf32, #tpu.memory_space<vmem>>, vector<1x32x128xf32>
    %25 = vector.shape_cast %24 : vector<1x32x128xf32> to vector<32x128xf32>
    %26 = arith.addf %23, %25 : vector<32x128xf32>
    %cst_17 = arith.constant 0.000000e+00 : f32
    %27 = vector.broadcast %cst_17 : f32 to vector<32x128xf32>
    %28 = arith.maximumf %26, %27 : vector<32x128xf32>
    %c1_18 = arith.constant 1 : index
    %c0_19 = arith.constant 0 : index
    %c0_20 = arith.constant 0 : index
    %29 = vector.load %arg5[%c1_18, %c0_19, %c0_20] : memref<2x32x128xf32, #tpu.memory_space<vmem>>, vector<1x32x128xf32>
    %30 = vector.shape_cast %29 : vector<1x32x128xf32> to vector<32x128xf32>
    %31 = vector.shape_cast %28 : vector<32x128xf32> to vector<1x32x128xf32>
    tpu.vector_store %arg5[%c1_18, %c0_19, %c0_20], %31 {strides = array<i32>} : memref<2x32x128xf32, #tpu.memory_space<vmem>>, vector<1x32x128xf32>,
    return
  }
  func.func @transform_0(%arg0: i32) -> (i32, i32, i32) {
    %c0_i32 = arith.constant 0 : i32
    %c0_i32_0 = arith.constant 0 : i32
    %c0_i32_1 = arith.constant 0 : i32
    return %arg0, %c0_i32, %c0_i32_0 : i32, i32, i32
  }
  func.func @transform_1(%arg0: i32) -> (i32, i32, i32) {
    %c0_i32 = arith.constant 0 : i32
    %c0_i32_0 = arith.constant 0 : i32
    %c0_i32_1 = arith.constant 0 : i32
    return %arg0, %c0_i32, %c0_i32_0 : i32, i32, i32
  }
  func.func @transform_2(%arg0: i32) -> (i32, i32) {
    %c0_i32 = arith.constant 0 : i32
    %c0_i32_0 = arith.constant 0 : i32
    %c0_i32_1 = arith.constant 0 : i32
    return %c0_i32, %c0_i32_0 : i32, i32
  }
  func.func @transform_3(%arg0: i32) -> (i32, i32) {
    %c0_i32 = arith.constant 0 : i32
    %c0_i32_0 = arith.constant 0 : i32
    %c0_i32_1 = arith.constant 0 : i32
    return %c0_i32, %c0_i32_0 : i32, i32
  }
  func.func @transform_4(%arg0: i32) -> (i32, i32, i32) {
    %c0_i32 = arith.constant 0 : i32
    %c0_i32_0 = arith.constant 0 : i32
    %c0_i32_1 = arith.constant 0 : i32
    return %arg0, %c0_i32, %c0_i32_0 : i32, i32, i32
  }
}

module attributes {stable_mosaic.version = 11 : i64} {
  func.func @_conv3_kernel(%arg0: i32, %arg1: memref<2x8x128xbf16, #tpu.memory_space<vmem>>, %arg2: memref<32x8xbf16, #tpu.memory_space<vmem>>, %arg3: memref<8x1xf32, #tpu.memory_space<vmem>>, %arg4: memref<8x1xf32, #tpu.memory_space<vmem>>, %arg5: memref<2x32x128xbf16, #tpu.memory_space<vmem>>, %arg6: memref<1x2x32xf32, #tpu.memory_space<vmem>>) attributes {dimension_semantics = [#tpu.dimension_semantics<parallel>], iteration_bounds = array<i64: 2>, scalar_prefetch = 0 : i64, scratch_operands = 0 : i64, tpu.core_type = #tpu.core_type<tc>, window_params = [{transform_indices = @transform_0, window_bounds = array<i64: 2, 8, 128>}, {pipeline_mode = #tpu.pipeline_mode<synchronous>, transform_indices = @transform_1, window_bounds = array<i64: 32, 8>}, {pipeline_mode = #tpu.pipeline_mode<synchronous>, transform_indices = @transform_2, window_bounds = array<i64: 8, 1>}, {pipeline_mode = #tpu.pipeline_mode<synchronous>, transform_indices = @transform_3, window_bounds = array<i64: 8, 1>}, {transform_indices = @transform_4, window_bounds = array<i64: 2, 32, 128>}, {transform_indices = @transform_5, window_bounds = array<i64: 1, 2, 32>}]} {
    %c0 = arith.constant 0 : index
    %c0_0 = arith.constant 0 : index
    %0 = vector.load %arg3[%c0, %c0_0] : memref<8x1xf32, #tpu.memory_space<vmem>>, vector<8x1xf32>
    %c0_1 = arith.constant 0 : index
    %c0_2 = arith.constant 0 : index
    %1 = vector.load %arg4[%c0_1, %c0_2] : memref<8x1xf32, #tpu.memory_space<vmem>>, vector<8x1xf32>
    %c0_3 = arith.constant 0 : index
    %c0_4 = arith.constant 0 : index
    %2 = vector.load %arg2[%c0_3, %c0_4] : memref<32x8xbf16, #tpu.memory_space<vmem>>, vector<32x8xbf16>
    %c0_5 = arith.constant 0 : index
    %c0_6 = arith.constant 0 : index
    %c0_7 = arith.constant 0 : index
    %3 = vector.load %arg1[%c0_5, %c0_6, %c0_7] : memref<2x8x128xbf16, #tpu.memory_space<vmem>>, vector<1x8x128xbf16>
    %4 = vector.shape_cast %3 : vector<1x8x128xbf16> to vector<8x128xbf16>
    %5 = arith.extf %4 : vector<8x128xbf16> to vector<8x128xf32>
    %6 = vector.broadcast %0 : vector<8x1xf32> to vector<8x128xf32>
    %7 = arith.mulf %5, %6 : vector<8x128xf32>
    %8 = vector.broadcast %1 : vector<8x1xf32> to vector<8x128xf32>
    %9 = arith.addf %7, %8 : vector<8x128xf32>
    %cst = arith.constant 0.000000e+00 : f32
    %10 = vector.broadcast %cst : f32 to vector<8x128xf32>
    %11 = arith.maximumf %9, %10 : vector<8x128xf32>
    %12 = arith.truncf %11 : vector<8x128xf32> to vector<8x128xbf16>
    %cst_8 = arith.constant dense<0.000000e+00> : vector<32x128xf32>
    %13 = tpu.matmul %2, %12, %cst_8 {dimension_numbers = #tpu.dot_dimension_numbers<[1], [0], [0], [1], [0, 0, 1, 1], [], []>} : vector<32x8xbf16>, vector<8x128xbf16>, vector<32x128xf32> -> vector<32x128xf32>
    %14 = arith.truncf %13 : vector<32x128xf32> to vector<32x128xbf16>
    %c0_9 = arith.constant 0 : index
    %c0_10 = arith.constant 0 : index
    %c0_11 = arith.constant 0 : index
    %15 = vector.load %arg5[%c0_9, %c0_10, %c0_11] : memref<2x32x128xbf16, #tpu.memory_space<vmem>>, vector<1x32x128xbf16>
    %16 = vector.shape_cast %15 : vector<1x32x128xbf16> to vector<32x128xbf16>
    %17 = vector.shape_cast %14 : vector<32x128xbf16> to vector<1x32x128xbf16>
    tpu.vector_store %arg5[%c0_9, %c0_10, %c0_11], %17 {strides = array<i32>} : memref<2x32x128xbf16, #tpu.memory_space<vmem>>, vector<1x32x128xbf16>,
    %18 = arith.mulf %13, %13 : vector<32x128xf32>
    %c1 = arith.constant 1 : index
    %c0_12 = arith.constant 0 : index
    %c0_13 = arith.constant 0 : index
    %19 = vector.load %arg1[%c1, %c0_12, %c0_13] : memref<2x8x128xbf16, #tpu.memory_space<vmem>>, vector<1x8x128xbf16>
    %20 = vector.shape_cast %19 : vector<1x8x128xbf16> to vector<8x128xbf16>
    %21 = arith.extf %20 : vector<8x128xbf16> to vector<8x128xf32>
    %22 = vector.broadcast %0 : vector<8x1xf32> to vector<8x128xf32>
    %23 = arith.mulf %21, %22 : vector<8x128xf32>
    %24 = vector.broadcast %1 : vector<8x1xf32> to vector<8x128xf32>
    %25 = arith.addf %23, %24 : vector<8x128xf32>
    %cst_14 = arith.constant 0.000000e+00 : f32
    %26 = vector.broadcast %cst_14 : f32 to vector<8x128xf32>
    %27 = arith.maximumf %25, %26 : vector<8x128xf32>
    %28 = arith.truncf %27 : vector<8x128xf32> to vector<8x128xbf16>
    %cst_15 = arith.constant dense<0.000000e+00> : vector<32x128xf32>
    %29 = tpu.matmul %2, %28, %cst_15 {dimension_numbers = #tpu.dot_dimension_numbers<[1], [0], [0], [1], [0, 0, 1, 1], [], []>} : vector<32x8xbf16>, vector<8x128xbf16>, vector<32x128xf32> -> vector<32x128xf32>
    %30 = arith.truncf %29 : vector<32x128xf32> to vector<32x128xbf16>
    %c1_16 = arith.constant 1 : index
    %c0_17 = arith.constant 0 : index
    %c0_18 = arith.constant 0 : index
    %31 = vector.load %arg5[%c1_16, %c0_17, %c0_18] : memref<2x32x128xbf16, #tpu.memory_space<vmem>>, vector<1x32x128xbf16>
    %32 = vector.shape_cast %31 : vector<1x32x128xbf16> to vector<32x128xbf16>
    %33 = vector.shape_cast %30 : vector<32x128xbf16> to vector<1x32x128xbf16>
    tpu.vector_store %arg5[%c1_16, %c0_17, %c0_18], %33 {strides = array<i32>} : memref<2x32x128xbf16, #tpu.memory_space<vmem>>, vector<1x32x128xbf16>,
    %34 = arith.addf %13, %29 : vector<32x128xf32>
    %35 = arith.mulf %29, %29 : vector<32x128xf32>
    %36 = arith.addf %18, %35 : vector<32x128xf32>
    %cst_19 = arith.constant 1.000000e+00 : f32
    %37 = vector.broadcast %cst_19 : f32 to vector<1x128xf32>
    "tpu.trace_start"() <{level = 10 : i32, message = "kl,cl->kc"}> : () -> ()
    %cst_20 = arith.constant dense<0.000000e+00> : vector<1x32xf32>
    %38 = tpu.matmul %37, %34, %cst_20 {dimension_numbers = #tpu.dot_dimension_numbers<[1], [1], [0], [0], [0, 0, 1, 0], [], []>} : vector<1x128xf32>, vector<32x128xf32>, vector<1x32xf32> -> vector<1x32xf32>
    %cst_21 = arith.constant dense<0.000000e+00> : vector<1x32xf32>
    %39 = tpu.matmul %37, %36, %cst_21 {dimension_numbers = #tpu.dot_dimension_numbers<[1], [1], [0], [0], [0, 0, 1, 0], [], []>} : vector<1x128xf32>, vector<32x128xf32>, vector<1x32xf32> -> vector<1x32xf32>
    "tpu.trace_stop"() : () -> ()
    %40 = tpu.concatenate %38, %39 in 0 : vector<1x32xf32>, vector<1x32xf32> -> vector<2x32xf32>
    %c0_22 = arith.constant 0 : index
    %c0_23 = arith.constant 0 : index
    %c0_24 = arith.constant 0 : index
    %41 = vector.load %arg6[%c0_22, %c0_23, %c0_24] : memref<1x2x32xf32, #tpu.memory_space<vmem>>, vector<1x2x32xf32>
    %42 = vector.shape_cast %41 : vector<1x2x32xf32> to vector<2x32xf32>
    %43 = vector.shape_cast %40 : vector<2x32xf32> to vector<1x2x32xf32>
    tpu.vector_store %arg6[%c0_22, %c0_23, %c0_24], %43 {strides = array<i32>} : memref<1x2x32xf32, #tpu.memory_space<vmem>>, vector<1x2x32xf32>,
    return
  }
  func.func @transform_0(%arg0: i32) -> (i32, i32, i32) {
    %c0_i32 = arith.constant 0 : i32
    %c0_i32_0 = arith.constant 0 : i32
    %c0_i32_1 = arith.constant 0 : i32
    return %arg0, %c0_i32, %c0_i32_0 : i32, i32, i32
  }
  func.func @transform_1(%arg0: i32) -> (i32, i32) {
    %c0_i32 = arith.constant 0 : i32
    %c0_i32_0 = arith.constant 0 : i32
    %c0_i32_1 = arith.constant 0 : i32
    return %c0_i32, %c0_i32_0 : i32, i32
  }
  func.func @transform_2(%arg0: i32) -> (i32, i32) {
    %c0_i32 = arith.constant 0 : i32
    %c0_i32_0 = arith.constant 0 : i32
    %c0_i32_1 = arith.constant 0 : i32
    return %c0_i32, %c0_i32_0 : i32, i32
  }
  func.func @transform_3(%arg0: i32) -> (i32, i32) {
    %c0_i32 = arith.constant 0 : i32
    %c0_i32_0 = arith.constant 0 : i32
    %c0_i32_1 = arith.constant 0 : i32
    return %c0_i32, %c0_i32_0 : i32, i32
  }
  func.func @transform_4(%arg0: i32) -> (i32, i32, i32) {
    %c0_i32 = arith.constant 0 : i32
    %c0_i32_0 = arith.constant 0 : i32
    %c0_i32_1 = arith.constant 0 : i32
    return %arg0, %c0_i32, %c0_i32_0 : i32, i32, i32
  }
  func.func @transform_5(%arg0: i32) -> (i32, i32, i32) {
    %c0_i32 = arith.constant 0 : i32
    %c0_i32_0 = arith.constant 0 : i32
    %c0_i32_1 = arith.constant 0 : i32
    return %arg0, %c0_i32, %c0_i32_0 : i32, i32, i32
  }
}

module attributes {stable_mosaic.version = 11 : i64} {
  func.func @_conv2_kernel(%arg0: i32, %arg1: memref<2x8x128xbf16, #tpu.memory_space<vmem>>, %arg2: memref<3x8x8xbf16, #tpu.memory_space<vmem>>, %arg3: memref<8x1xf32, #tpu.memory_space<vmem>>, %arg4: memref<8x1xf32, #tpu.memory_space<vmem>>, %arg5: memref<2x8x128xbf16, #tpu.memory_space<vmem>>, %arg6: memref<1x2x8xf32, #tpu.memory_space<vmem>>) attributes {dimension_semantics = [#tpu.dimension_semantics<parallel>], iteration_bounds = array<i64: 2>, scalar_prefetch = 0 : i64, scratch_operands = 0 : i64, tpu.core_type = #tpu.core_type<tc>, window_params = [{transform_indices = @transform_0, window_bounds = array<i64: 2, 8, 128>}, {pipeline_mode = #tpu.pipeline_mode<synchronous>, transform_indices = @transform_1, window_bounds = array<i64: 3, 8, 8>}, {pipeline_mode = #tpu.pipeline_mode<synchronous>, transform_indices = @transform_2, window_bounds = array<i64: 8, 1>}, {pipeline_mode = #tpu.pipeline_mode<synchronous>, transform_indices = @transform_3, window_bounds = array<i64: 8, 1>}, {transform_indices = @transform_4, window_bounds = array<i64: 2, 8, 128>}, {transform_indices = @transform_5, window_bounds = array<i64: 1, 2, 8>}]} {
    %c0 = arith.constant 0 : index
    %c0_0 = arith.constant 0 : index
    %0 = vector.load %arg3[%c0, %c0_0] : memref<8x1xf32, #tpu.memory_space<vmem>>, vector<8x1xf32>
    %c0_1 = arith.constant 0 : index
    %c0_2 = arith.constant 0 : index
    %1 = vector.load %arg4[%c0_1, %c0_2] : memref<8x1xf32, #tpu.memory_space<vmem>>, vector<8x1xf32>
    %c0_3 = arith.constant 0 : index
    %c0_4 = arith.constant 0 : index
    %c0_5 = arith.constant 0 : index
    %2 = vector.load %arg2[%c0_3, %c0_4, %c0_5] : memref<3x8x8xbf16, #tpu.memory_space<vmem>>, vector<1x8x8xbf16>
    %3 = vector.shape_cast %2 : vector<1x8x8xbf16> to vector<8x8xbf16>
    %c1 = arith.constant 1 : index
    %c0_6 = arith.constant 0 : index
    %c0_7 = arith.constant 0 : index
    %4 = vector.load %arg2[%c1, %c0_6, %c0_7] : memref<3x8x8xbf16, #tpu.memory_space<vmem>>, vector<1x8x8xbf16>
    %5 = vector.shape_cast %4 : vector<1x8x8xbf16> to vector<8x8xbf16>
    %c2 = arith.constant 2 : index
    %c0_8 = arith.constant 0 : index
    %c0_9 = arith.constant 0 : index
    %6 = vector.load %arg2[%c2, %c0_8, %c0_9] : memref<3x8x8xbf16, #tpu.memory_space<vmem>>, vector<1x8x8xbf16>
    %7 = vector.shape_cast %6 : vector<1x8x8xbf16> to vector<8x8xbf16>
    %c0_10 = arith.constant 0 : index
    %c0_11 = arith.constant 0 : index
    %c0_12 = arith.constant 0 : index
    %8 = vector.load %arg1[%c0_10, %c0_11, %c0_12] : memref<2x8x128xbf16, #tpu.memory_space<vmem>>, vector<1x8x128xbf16>
    %9 = vector.shape_cast %8 : vector<1x8x128xbf16> to vector<8x128xbf16>
    %10 = arith.extf %9 : vector<8x128xbf16> to vector<8x128xf32>
    %11 = vector.broadcast %0 : vector<8x1xf32> to vector<8x128xf32>
    %12 = arith.mulf %10, %11 : vector<8x128xf32>
    %13 = vector.broadcast %1 : vector<8x1xf32> to vector<8x128xf32>
    %14 = arith.addf %12, %13 : vector<8x128xf32>
    %cst = arith.constant 0.000000e+00 : f32
    %15 = vector.broadcast %cst : f32 to vector<8x128xf32>
    %16 = arith.maximumf %14, %15 : vector<8x128xf32>
    %17 = tpu.iota {dimensions = array<i32: 1>} : vector<8x128xi32>
    %c0_i32 = arith.constant 0 : i32
    %18 = vector.broadcast %c0_i32 : i32 to vector<8x128xi32>
    %19 = arith.cmpi eq, %17, %18 : vector<8x128xi32>
    %c1_i32 = arith.constant 1 : i32
    %20 = tpu.dynamic_rotate %16 by %c1_i32 dim 1 : vector<8x128xf32>, i32 -> vector<8x128xf32>
    %cst_13 = arith.constant 0.000000e+00 : f32
    %21 = vector.broadcast %cst_13 : f32 to vector<8x128xf32>
    %22 = arith.select %19, %21, %20 : vector<8x128xi1>, vector<8x128xf32>
    %c127_i32 = arith.constant 127 : i32
    %23 = vector.broadcast %c127_i32 : i32 to vector<8x128xi32>
    %24 = arith.cmpi eq, %17, %23 : vector<8x128xi32>
    %c127_i32_14 = arith.constant 127 : i32
    %25 = tpu.dynamic_rotate %16 by %c127_i32_14 dim 1 : vector<8x128xf32>, i32 -> vector<8x128xf32>
    %cst_15 = arith.constant 0.000000e+00 : f32
    %26 = vector.broadcast %cst_15 : f32 to vector<8x128xf32>
    %27 = arith.select %24, %26, %25 : vector<8x128xi1>, vector<8x128xf32>
    %28 = arith.truncf %22 : vector<8x128xf32> to vector<8x128xbf16>
    %cst_16 = arith.constant dense<0.000000e+00> : vector<8x128xf32>
    %29 = tpu.matmul %3, %28, %cst_16 {dimension_numbers = #tpu.dot_dimension_numbers<[1], [0], [0], [1], [0, 0, 1, 1], [], []>} : vector<8x8xbf16>, vector<8x128xbf16>, vector<8x128xf32> -> vector<8x128xf32>
    %30 = arith.truncf %16 : vector<8x128xf32> to vector<8x128xbf16>
    %cst_17 = arith.constant dense<0.000000e+00> : vector<8x128xf32>
    %31 = tpu.matmul %5, %30, %cst_17 {dimension_numbers = #tpu.dot_dimension_numbers<[1], [0], [0], [1], [0, 0, 1, 1], [], []>} : vector<8x8xbf16>, vector<8x128xbf16>, vector<8x128xf32> -> vector<8x128xf32>
    %32 = arith.addf %29, %31 : vector<8x128xf32>
    %33 = arith.truncf %27 : vector<8x128xf32> to vector<8x128xbf16>
    %cst_18 = arith.constant dense<0.000000e+00> : vector<8x128xf32>
    %34 = tpu.matmul %7, %33, %cst_18 {dimension_numbers = #tpu.dot_dimension_numbers<[1], [0], [0], [1], [0, 0, 1, 1], [], []>} : vector<8x8xbf16>, vector<8x128xbf16>, vector<8x128xf32> -> vector<8x128xf32>
    %35 = arith.addf %32, %34 : vector<8x128xf32>
    %36 = arith.truncf %35 : vector<8x128xf32> to vector<8x128xbf16>
    %c0_19 = arith.constant 0 : index
    %c0_20 = arith.constant 0 : index
    %c0_21 = arith.constant 0 : index
    %37 = vector.load %arg5[%c0_19, %c0_20, %c0_21] : memref<2x8x128xbf16, #tpu.memory_space<vmem>>, vector<1x8x128xbf16>
    %38 = vector.shape_cast %37 : vector<1x8x128xbf16> to vector<8x128xbf16>
    %39 = vector.shape_cast %36 : vector<8x128xbf16> to vector<1x8x128xbf16>
    tpu.vector_store %arg5[%c0_19, %c0_20, %c0_21], %39 {strides = array<i32>} : memref<2x8x128xbf16, #tpu.memory_space<vmem>>, vector<1x8x128xbf16>,
    %40 = arith.mulf %35, %35 : vector<8x128xf32>
    %c1_22 = arith.constant 1 : index
    %c0_23 = arith.constant 0 : index
    %c0_24 = arith.constant 0 : index
    %41 = vector.load %arg1[%c1_22, %c0_23, %c0_24] : memref<2x8x128xbf16, #tpu.memory_space<vmem>>, vector<1x8x128xbf16>
    %42 = vector.shape_cast %41 : vector<1x8x128xbf16> to vector<8x128xbf16>
    %43 = arith.extf %42 : vector<8x128xbf16> to vector<8x128xf32>
    %44 = vector.broadcast %0 : vector<8x1xf32> to vector<8x128xf32>
    %45 = arith.mulf %43, %44 : vector<8x128xf32>
    %46 = vector.broadcast %1 : vector<8x1xf32> to vector<8x128xf32>
    %47 = arith.addf %45, %46 : vector<8x128xf32>
    %cst_25 = arith.constant 0.000000e+00 : f32
    %48 = vector.broadcast %cst_25 : f32 to vector<8x128xf32>
    %49 = arith.maximumf %47, %48 : vector<8x128xf32>
    %50 = tpu.iota {dimensions = array<i32: 1>} : vector<8x128xi32>
    %c0_i32_26 = arith.constant 0 : i32
    %51 = vector.broadcast %c0_i32_26 : i32 to vector<8x128xi32>
    %52 = arith.cmpi eq, %50, %51 : vector<8x128xi32>
    %c1_i32_27 = arith.constant 1 : i32
    %53 = tpu.dynamic_rotate %49 by %c1_i32_27 dim 1 : vector<8x128xf32>, i32 -> vector<8x128xf32>
    %cst_28 = arith.constant 0.000000e+00 : f32
    %54 = vector.broadcast %cst_28 : f32 to vector<8x128xf32>
    %55 = arith.select %52, %54, %53 : vector<8x128xi1>, vector<8x128xf32>
    %c127_i32_29 = arith.constant 127 : i32
    %56 = vector.broadcast %c127_i32_29 : i32 to vector<8x128xi32>
    %57 = arith.cmpi eq, %50, %56 : vector<8x128xi32>
    %c127_i32_30 = arith.constant 127 : i32
    %58 = tpu.dynamic_rotate %49 by %c127_i32_30 dim 1 : vector<8x128xf32>, i32 -> vector<8x128xf32>
    %cst_31 = arith.constant 0.000000e+00 : f32
    %59 = vector.broadcast %cst_31 : f32 to vector<8x128xf32>
    %60 = arith.select %57, %59, %58 : vector<8x128xi1>, vector<8x128xf32>
    %61 = arith.truncf %55 : vector<8x128xf32> to vector<8x128xbf16>
    %cst_32 = arith.constant dense<0.000000e+00> : vector<8x128xf32>
    %62 = tpu.matmul %3, %61, %cst_32 {dimension_numbers = #tpu.dot_dimension_numbers<[1], [0], [0], [1], [0, 0, 1, 1], [], []>} : vector<8x8xbf16>, vector<8x128xbf16>, vector<8x128xf32> -> vector<8x128xf32>
    %63 = arith.truncf %49 : vector<8x128xf32> to vector<8x128xbf16>
    %cst_33 = arith.constant dense<0.000000e+00> : vector<8x128xf32>
    %64 = tpu.matmul %5, %63, %cst_33 {dimension_numbers = #tpu.dot_dimension_numbers<[1], [0], [0], [1], [0, 0, 1, 1], [], []>} : vector<8x8xbf16>, vector<8x128xbf16>, vector<8x128xf32> -> vector<8x128xf32>
    %65 = arith.addf %62, %64 : vector<8x128xf32>
    %66 = arith.truncf %60 : vector<8x128xf32> to vector<8x128xbf16>
    %cst_34 = arith.constant dense<0.000000e+00> : vector<8x128xf32>
    %67 = tpu.matmul %7, %66, %cst_34 {dimension_numbers = #tpu.dot_dimension_numbers<[1], [0], [0], [1], [0, 0, 1, 1], [], []>} : vector<8x8xbf16>, vector<8x128xbf16>, vector<8x128xf32> -> vector<8x128xf32>
    %68 = arith.addf %65, %67 : vector<8x128xf32>
    %69 = arith.truncf %68 : vector<8x128xf32> to vector<8x128xbf16>
    %c1_35 = arith.constant 1 : index
    %c0_36 = arith.constant 0 : index
    %c0_37 = arith.constant 0 : index
    %70 = vector.load %arg5[%c1_35, %c0_36, %c0_37] : memref<2x8x128xbf16, #tpu.memory_space<vmem>>, vector<1x8x128xbf16>
    %71 = vector.shape_cast %70 : vector<1x8x128xbf16> to vector<8x128xbf16>
    %72 = vector.shape_cast %69 : vector<8x128xbf16> to vector<1x8x128xbf16>
    tpu.vector_store %arg5[%c1_35, %c0_36, %c0_37], %72 {strides = array<i32>} : memref<2x8x128xbf16, #tpu.memory_space<vmem>>, vector<1x8x128xbf16>,
    %73 = arith.addf %35, %68 : vector<8x128xf32>
    %74 = arith.mulf %68, %68 : vector<8x128xf32>
    %75 = arith.addf %40, %74 : vector<8x128xf32>
    %cst_38 = arith.constant 1.000000e+00 : f32
    %76 = vector.broadcast %cst_38 : f32 to vector<1x128xf32>
    "tpu.trace_start"() <{level = 10 : i32, message = "kl,cl->kc"}> : () -> ()
    %cst_39 = arith.constant dense<0.000000e+00> : vector<1x8xf32>
    %77 = tpu.matmul %76, %73, %cst_39 {dimension_numbers = #tpu.dot_dimension_numbers<[1], [1], [0], [0], [0, 0, 1, 0], [], []>} : vector<1x128xf32>, vector<8x128xf32>, vector<1x8xf32> -> vector<1x8xf32>
    %cst_40 = arith.constant dense<0.000000e+00> : vector<1x8xf32>
    %78 = tpu.matmul %76, %75, %cst_40 {dimension_numbers = #tpu.dot_dimension_numbers<[1], [1], [0], [0], [0, 0, 1, 0], [], []>} : vector<1x128xf32>, vector<8x128xf32>, vector<1x8xf32> -> vector<1x8xf32>
    "tpu.trace_stop"() : () -> ()
    %79 = tpu.concatenate %77, %78 in 0 : vector<1x8xf32>, vector<1x8xf32> -> vector<2x8xf32>
    %c0_41 = arith.constant 0 : index
    %c0_42 = arith.constant 0 : index
    %c0_43 = arith.constant 0 : index
    %80 = vector.load %arg6[%c0_41, %c0_42, %c0_43] : memref<1x2x8xf32, #tpu.memory_space<vmem>>, vector<1x2x8xf32>
    %81 = vector.shape_cast %80 : vector<1x2x8xf32> to vector<2x8xf32>
    %82 = vector.shape_cast %79 : vector<2x8xf32> to vector<1x2x8xf32>
    tpu.vector_store %arg6[%c0_41, %c0_42, %c0_43], %82 {strides = array<i32>} : memref<1x2x8xf32, #tpu.memory_space<vmem>>, vector<1x2x8xf32>,
    return
  }
  func.func @transform_0(%arg0: i32) -> (i32, i32, i32) {
    %c0_i32 = arith.constant 0 : i32
    %c0_i32_0 = arith.constant 0 : i32
    %c0_i32_1 = arith.constant 0 : i32
    return %arg0, %c0_i32, %c0_i32_0 : i32, i32, i32
  }
  func.func @transform_1(%arg0: i32) -> (i32, i32, i32) {
    %c0_i32 = arith.constant 0 : i32
    %c0_i32_0 = arith.constant 0 : i32
    %c0_i32_1 = arith.constant 0 : i32
    %c0_i32_2 = arith.constant 0 : i32
    return %c0_i32, %c0_i32_0, %c0_i32_1 : i32, i32, i32
  }
  func.func @transform_2(%arg0: i32) -> (i32, i32) {
    %c0_i32 = arith.constant 0 : i32
    %c0_i32_0 = arith.constant 0 : i32
    %c0_i32_1 = arith.constant 0 : i32
    return %c0_i32, %c0_i32_0 : i32, i32
  }
  func.func @transform_3(%arg0: i32) -> (i32, i32) {
    %c0_i32 = arith.constant 0 : i32
    %c0_i32_0 = arith.constant 0 : i32
    %c0_i32_1 = arith.constant 0 : i32
    return %c0_i32, %c0_i32_0 : i32, i32
  }
  func.func @transform_4(%arg0: i32) -> (i32, i32, i32) {
    %c0_i32 = arith.constant 0 : i32
    %c0_i32_0 = arith.constant 0 : i32
    %c0_i32_1 = arith.constant 0 : i32
    return %arg0, %c0_i32, %c0_i32_0 : i32, i32, i32
  }
  func.func @transform_5(%arg0: i32) -> (i32, i32, i32) {
    %c0_i32 = arith.constant 0 : i32
    %c0_i32_0 = arith.constant 0 : i32
    %c0_i32_1 = arith.constant 0 : i32
    return %arg0, %c0_i32, %c0_i32_0 : i32, i32, i32
  }
}

</mosaic_0001>

<llo_original>
// kernel: bottleneck_forward.4
$region0: #{bottleneck_forward.4}
  #allocation0 [shape = 'u32[]', space=smem, size = 0x4, offset = 0x4, fixed_abs, tag = 'smem constant byte address 0x4 - core index']
  #allocation1 [shape = 'u32[72,128]{1,0:T(1,128)}', space=vmem, size = 0x9000, scoped, tag = 'internal scratch']
  %s0 = inlined_call_operand.hbm [shape: f32[4,32,128], index: 0, kind: input, shape index: {}]
  %s1 = inlined_call_operand.vmem [shape: bf16[8,32], index: 1, kind: input, shape index: {}]
  %s2 = inlined_call_operand.vmem [shape: bf16[4,8,128], index: 2, kind: output, shape index: {0}]
  %s3 = inlined_call_operand.vmem [shape: f32[2,2,8], index: 3, kind: output, shape index: {1}]
  %4 = xla_tuple %s2, %s3
  %s5 = sld [smem:[#allocation0]]
  $region53: #{bottleneck_forward.4} parent=0
    _
  %s7 = ssub.s32 1, %s5
  %s8 = scalar_select 0, %s7, %s5
  $region1: #{bottleneck_forward.4} parent=0
    #allocation2 [shape = 'u8[65536]{0}', space=vmem, size = 0x10000, scoped, tag = 'input window, operand 0']
    #allocation3 [shape = 's32[2]{0}', space=sflag, size = 0x8, scoped, tag = 'scoped memory for bottleneck_forward.4']
    %9 = vsyncpa [#allocation3], 0
    %s10 = scalar_lea.sflag [#allocation3], 1
    %11 = vsyncpa %s10, 0
    loop: start=0, step=1, limit=4
    $region2: #{bottleneck_forward.4} parent=1 // loop_pre_header
      _
    $region3: #{bottleneck_forward.4} parent=1 // loop_header
      %s13 = sphi 0, %s17
      %p14 = scmp.ge.s32.totalorder %s13, 4
      %s23 = sphi 0, %s25
      %s26 = sphi 0, %s23
      %s27 = sphi 0, %s26
      %s43 = sphi 0, %s27
      %s47 = sphi 0, %s47
      %s49 = sphi 0, %s47
      %s50 = sphi 0, %s49
      %s64 = sphi 0, %s50
      %s70 = sphi 0, %s72
      %s73 = sphi 0, %s70
      %s74 = sphi 0, %s73
      %s90 = sphi 0, %s74
      %s96 = sphi 0, %s98
      %s99 = sphi 0, %s96
      %s100 = sphi 0, %s99
      %s116 = sphi 0, %s100
    $region4: #{bottleneck_forward.4} parent=1 // loop_header_branch
      %16 = sbr.rel (%p14) target = $region8
    $region5: #{bottleneck_forward.4} parent=1 // loop_body
      %s18 = ssub.s32 %s13, 1
      %s19 = ssub.s32 %s13, 2
      %s20 = sadd.s32 %s13, 1
      %s21 = ssub.s32 %s13, %s20
      %p22 = scmp.eq.s32.totalorder %s21, 0
      %s24 = sadd.s32 %s23, 1
      %s25 = scalar_select %p22, %s23, %s24
      %p28 = pneg %p22
      %p29 = scmp.eq.s32.totalorder %s13, 1
      %p30 = por %p28, %p29
      %p31 = scmp.ne.s32.totalorder %s23, %s26
      %p32 = scmp.eq.s32.totalorder %s13, 0
      %p33 = por %p31, %p32
      %p34 = scmp.ne.s32.totalorder %s23, %s26
      %p35 = scmp.eq.s32.totalorder %s18, 1
      %p36 = por %p34, %p35
      %p37 = scmp.ne.s32.totalorder %s26, %s27
      %p38 = scmp.eq.s32.totalorder %s18, 0
      %p39 = por %p37, %p38
      %p40 = scmp.ne.s32.totalorder %s26, %s27
      %p41 = scmp.eq.s32.totalorder %s19, 1
      %p42 = por %p40, %p41
      %p44 = scmp.ne.s32.totalorder %s27, %s43
      %p45 = scmp.eq.s32.totalorder %s19, 0
      %p46 = por %p44, %p45
      %s48 = sadd.s32 %s47, 1
      %p51 = scmp.eq.s32.totalorder %s13, 1
      %p52 = scmp.ne.s32.totalorder %s47, %s49
      %p53 = scmp.eq.s32.totalorder %s13, 0
      %p54 = por %p52, %p53
      %p55 = scmp.ne.s32.totalorder %s47, %s49
      %p56 = scmp.eq.s32.totalorder %s18, 1
      %p57 = por %p55, %p56
      %p58 = scmp.ne.s32.totalorder %s49, %s50
      %p59 = scmp.eq.s32.totalorder %s18, 0
      %p60 = por %p58, %p59
      %p61 = scmp.ne.s32.totalorder %s49, %s50
      %p62 = scmp.eq.s32.totalorder %s19, 1
      %p63 = por %p61, %p62
      %p65 = scmp.ne.s32.totalorder %s50, %s64
      %p66 = scmp.eq.s32.totalorder %s19, 0
      %p67 = por %p65, %p66
      %s68 = ssub.s32 %s13, %s20
      %p69 = scmp.eq.s32.totalorder %s68, 0
      %s71 = sadd.s32 %s70, 1
      %s72 = scalar_select %p69, %s70, %s71
      %p75 = pneg %p69
      %p76 = scmp.eq.s32.totalorder %s13, 1
      %p77 = por %p75, %p76
      %p78 = scmp.ne.s32.totalorder %s70, %s73
      %p79 = scmp.eq.s32.totalorder %s13, 0
      %p80 = por %p78, %p79
      %p81 = scmp.ne.s32.totalorder %s70, %s73
      %p82 = scmp.eq.s32.totalorder %s18, 1
      %p83 = por %p81, %p82
      %p84 = scmp.ne.s32.totalorder %s73, %s74
      %p85 = scmp.eq.s32.totalorder %s18, 0
      %p86 = por %p84, %p85
      %p87 = scmp.ne.s32.totalorder %s73, %s74
      %p88 = scmp.eq.s32.totalorder %s19, 1
      %p89 = por %p87, %p88
      %p91 = scmp.ne.s32.totalorder %s74, %s90
      %p92 = scmp.eq.s32.totalorder %s19, 0
      %p93 = por %p91, %p92
      %s94 = ssub.s32 %s13, %s20
      %p95 = scmp.eq.s32.totalorder %s94, 0
      %s97 = sadd.s32 %s96, 1
      %s98 = scalar_select %p95, %s96, %s97
      %p101 = pneg %p95
      %p102 = scmp.eq.s32.totalorder %s13, 1
      %p103 = por %p101, %p102
      %p104 = scmp.ne.s32.totalorder %s96, %s99
      %p105 = scmp.eq.s32.totalorder %s13, 0
      %p106 = por %p104, %p105
      %p107 = scmp.ne.s32.totalorder %s96, %s99
      %p108 = scmp.eq.s32.totalorder %s18, 1
      %p109 = por %p107, %p108
      %p110 = scmp.ne.s32.totalorder %s99, %s100
      %p111 = scmp.eq.s32.totalorder %s18, 0
      %p112 = por %p110, %p111
      %p113 = scmp.ne.s32.totalorder %s99, %s100
      %p114 = scmp.eq.s32.totalorder %s19, 1
      %p115 = por %p113, %p114
      %p117 = scmp.ne.s32.totalorder %s100, %s116
      %p118 = scmp.eq.s32.totalorder %s19, 0
      %p119 = por %p117, %p118
      %p120 = scmp.le.s32.totalorder 1, %s13
      %p121 = scmp.lt.s32.totalorder %s13, 3
      %p122 = pnand %p120, %p121
      %p123 = pneg %p122
      // Predicated region
      $region9: #{bottleneck_forward.4} parent=5 // pred_check
        _
      $region10: #{bottleneck_forward.4} parent=5 // pred_check_branch
        %125 = sbr.rel (%p122) target = $region12
      $region11: #{bottleneck_forward.4} parent=5 // pred_region
        %s126 = ssub.s32 %s13, 1
        // Predicated region
        $region13: #{bottleneck_forward.4} parent=11 // pred_check
          %p127 = pneg %p60
        $region14: #{bottleneck_forward.4} parent=11 // pred_check_branch
          %129 = sbr.rel (%p127) target = $region16
        $region15: #{bottleneck_forward.4} parent=11 // pred_region
          _
        $region16: #{bottleneck_forward.4} parent=11 // pred_fallthru
          _
      $region12: #{bottleneck_forward.4} parent=5 // pred_fallthru
        _
      %p130 = scmp.lt.s32.totalorder %s13, 2
      // Predicated region
      $region17: #{bottleneck_forward.4} parent=5 // pred_check
        %p131 = pneg %p130
      $region18: #{bottleneck_forward.4} parent=5 // pred_check_branch
        %133 = sbr.rel (%p131) target = $region20
      $region19: #{bottleneck_forward.4} parent=5 // pred_region
        // Predicated region
        $region21: #{bottleneck_forward.4} parent=19 // pred_check
          %p134 = pneg %p33
        $region22: #{bottleneck_forward.4} parent=19 // pred_check_branch
          %136 = sbr.rel (%p134) target = $region24
        $region23: #{bottleneck_forward.4} parent=19 // pred_region
          %s137 = sand.u32 %s23, 1
          %s138 = scalar_lea.sflag [#allocation3], %s137
          %s139 = sand.u32 %s23, 1
          %s140 = smul.addr %s139, 64
          %s141 = scalar_lea.vmem [#allocation2], %s140
          %s142 = smul.u32 2, %s13
          %144 = vsyncadd %s138, 0
          %s145 = smul.addr %s142, 4
          %s146 = smul.addr %s145, 8
          %s147 = scalar_lea.hbm %s0, %s146
          %s148 = sshll.u32 %s147, 4
          %s149 = int_to_ptr.hbm [resolvable:$true] %s148
          %s150 = sshll.u32 %s141, 4
          %s151 = int_to_ptr.vmem [resolvable:$true] %s150
          %156 = dma.hbm_to_vmem [thread:$0]  %s149, 1024, %s151, %s138, 128, 128, 8
        $region24: #{bottleneck_forward.4} parent=19 // pred_fallthru
          _
      $region20: #{bottleneck_forward.4} parent=5 // pred_fallthru
        _
      %p157 = scmp.le.s32.totalorder 1, %s13
      %p158 = scmp.lt.s32.totalorder %s13, 3
      %p159 = pnand %p157, %p158
      %p160 = pneg %p159
      // Predicated region
      $region25: #{bottleneck_forward.4} parent=5 // pred_check
        _
      $region26: #{bottleneck_forward.4} parent=5 // pred_check_branch
        %162 = sbr.rel (%p159) target = $region28
      $region27: #{bottleneck_forward.4} parent=5 // pred_region
        %s163 = ssub.s32 %s13, 1
        %s164 = sand.u32 %s26, 1
        %s165 = scalar_lea.sflag [#allocation3], %s164
        %s166 = sand.u32 %s26, 1
        %s167 = smul.addr %s166, 64
        %s168 = scalar_lea.vmem [#allocation2], %s167
        // Predicated region
        $region29: #{bottleneck_forward.4} parent=27 // pred_check
          %p169 = pneg %p39
        $region30: #{bottleneck_forward.4} parent=27 // pred_check_branch
          %171 = sbr.rel (%p169) target = $region32
        $region31: #{bottleneck_forward.4} parent=27 // pred_region
          %173 = dma.done %s165, 1024
        $region32: #{bottleneck_forward.4} parent=27 // pred_fallthru
          _
        %s174 = sand.u32 %s26, 1
        %s175 = scalar_lea.sflag [#allocation3], %s174
        %s176 = sand.u32 %s26, 1
        %s177 = smul.addr %s176, 64
        %s178 = scalar_lea.vmem [#allocation2], %s177
        %p179 = pneg %p39
        %p180 = pneg %p36
        %p181 = pneg %p60
        %p182 = pneg %p57
        %p183 = pneg %p86
        %p184 = pneg %p83
        %s185 = smul.u32 2, %s18
        %p186 = scmp.lt.s32.totalorder %s185, 3
        %s187 = scalar_select %p186, %s185, 3
        %s188 = smul.addr %s187, 4
        %s189 = scalar_lea.vmem %s2, %s188
        %p190 = pneg %p112
        %p191 = pneg %p109
        %p192 = scmp.lt.s32.totalorder %s18, 1
        %s193 = scalar_select %p192, %s18, 1
        %s194 = smul.addr %s193, 2
        %s195 = scalar_lea.vmem %s3, %s194
        %s196 = smul.u32 2, %s18
        %s197 = smul.u32 2, %s18
        %p198 = scmp.lt.s32.totalorder %s197, 3
        %s199 = scalar_select %p198, %s197, 3
        %s200 = smul.addr %s199, 4
        %s201 = scalar_lea.vmem %s2, %s200
        %s202 = smul.u32 2, %s18
        %p203 = scmp.lt.s32.totalorder %s18, 1
        %s204 = scalar_select %p203, %s18, 1
        %s205 = smul.addr %s204, 2
        %s206 = scalar_lea.vmem %s3, %s205
        %v208 = vld [vmem:[%s1] sm:$0xf]
        %v209 = vld [vmem:[%s168] sm:$0xff]
        %v210 = vld [vmem:[%s168 + $0x8] sm:$0xff]
        %v211 = vld [vmem:[%s168 + $0x10] sm:$0xff]
        %v212 = vld [vmem:[%s168 + $0x18] sm:$0xff]
        %v213 = vpack.c.bf16 %v210, %v209
        %v214 = vpack.c.bf16 %v212, %v211
        %vm215 = vcmask 261120
        %v217 = vsel %vm215, %v208, 0
        %219 = vmatpush.bf16.msra.mxu0 0
        %220 = vmatpush.bf16.msra.mxu0 0
        %221 = vmatpush.bf16.msra.mxu0 0
        %222 = vmatpush.bf16.msra.mxu0 0
        %223 = vmatpush.bf16.msra.mxu0 0
        %224 = vmatpush.bf16.msra.mxu0 0
        %225 = vmatpush.bf16.msra.mxu0 %v214
        %226 = vmatpush.bf16.msra.mxu0 %v213
        %227 = vmatmul.bf16.gmra.mxu0 %v217
        %v228 = vpop.f32.mrf.mxu0
        %v229 = vadd.f32 0.0, %v228
        %v230 = vpop.f32.mrf.mxu0
        %231 = vdwg.mxu0
        %v232 = vpack.c.bf16 %v229, %v229
        %233 = vst [vmem:[%s201] sm:$0xf] %v232
        %v234 = vmul.f32 %v229, %v229
        %s235 = scalar_lea.vmem %s168, 32 [#allocation2]
        %v236 = vld [vmem:[%s235] sm:$0xff]
        %v237 = vld [vmem:[%s235 + $0x8] sm:$0xff]
        %v238 = vld [vmem:[%s235 + $0x10] sm:$0xff]
        %v239 = vld [vmem:[%s235 + $0x18] sm:$0xff]
        %v240 = vpack.c.bf16 %v237, %v236
        %v241 = vpack.c.bf16 %v239, %v238
        %242 = vmatpush.bf16.msra.mxu0 0
        %243 = vmatpush.bf16.msra.mxu0 0
        %244 = vmatpush.bf16.msra.mxu0 0
        %245 = vmatpush.bf16.msra.mxu0 0
        %246 = vmatpush.bf16.msra.mxu0 0
        %247 = vmatpush.bf16.msra.mxu0 0
        %248 = vmatpush.bf16.msra.mxu0 %v241
        %249 = vmatpush.bf16.msra.mxu0 %v240
        %250 = vmatmul.bf16.gmra.mxu0 %v217
        %v251 = vpop.f32.mrf.mxu0
        %v252 = vadd.f32 0.0, %v251
        %v253 = vpop.f32.mrf.mxu0
        %254 = vdwg.mxu0
        %v255 = vpack.c.bf16 %v252, %v252
        %s256 = scalar_lea.vmem %s201, 4
        %257 = vst [vmem:[%s256] sm:$0xf] %v255
        %v258 = vadd.f32 %v229, %v252
        %v259 = vmul.f32 %v252, %v252
        %v260 = vadd.f32 %v234, %v259
        %261 = vmatpush.xpose.msra.mxu0 0.0
        %262 = vmatpush.xpose.msra.mxu0 0.0
        %263 = vmatpush.xpose.msra.mxu0 0.0
        %264 = vmatpush.xpose.msra.mxu0 0.0
        %265 = vmatpush.xpose.msra.mxu0 0.0
        %266 = vmatpush.xpose.msra.mxu0 0.0
        %267 = vmatpush.xpose.msra.mxu0 0.0
        %268 = vmatpush.xpose.msra.mxu0 0.0
        %269 = vmatpush.xpose.msra.mxu0 0.0
        %270 = vmatpush.xpose.msra.mxu0 0.0
        %271 = vmatpush.xpose.msra.mxu0 0.0
        %272 = vmatpush.xpose.msra.mxu0 0.0
        %273 = vmatpush.xpose.msra.mxu0 0.0
        %274 = vmatpush.xpose.msra.mxu0 0.0
        %275 = vmatpush.xpose.msra.mxu0 0.0
        %276 = vmatpush.xpose.msra.mxu0 %v258
        %277 = vmatmul.f32.gmra.mxu0 1.0
        %v278 = vpop.f32.mrf.mxu0
        %v279 = vadd.f32 0.0, %v278
        %280 = vdwg.mxu0
        %281 = vmatpush.xpose.msra.mxu0 0.0
        %282 = vmatpush.xpose.msra.mxu0 0.0
        %283 = vmatpush.xpose.msra.mxu0 0.0
        %284 = vmatpush.xpose.msra.mxu0 0.0
        %285 = vmatpush.xpose.msra.mxu0 0.0
        %286 = vmatpush.xpose.msra.mxu0 0.0
        %287 = vmatpush.xpose.msra.mxu0 0.0
        %288 = vmatpush.xpose.msra.mxu0 0.0
        %289 = vmatpush.xpose.msra.mxu0 0.0
        %290 = vmatpush.xpose.msra.mxu0 0.0
        %291 = vmatpush.xpose.msra.mxu0 0.0
        %292 = vmatpush.xpose.msra.mxu0 0.0
        %293 = vmatpush.xpose.msra.mxu0 0.0
        %294 = vmatpush.xpose.msra.mxu0 0.0
        %295 = vmatpush.xpose.msra.mxu0 0.0
        %296 = vmatpush.xpose.msra.mxu0 %v260
        %297 = vmatmul.f32.gmra.mxu0 1.0
        %v298 = vpop.f32.mrf.mxu0
        %v299 = vadd.f32 0.0, %v298
        %300 = vdwg.mxu0
        %v302 = vrot.slane %v299, 7
        %vm304 = vcmask 1040384
        %v305 = vsel %vm304, %v279, %v302
        %vm306 = vcmask 58368
        %307 = vst.msk [vmem:[%s206] sm:$0x3] %vm306, %v305
        %s308 = smul.u32 2, %s18
        %p309 = scmp.lt.s32.totalorder %s308, 3
        %s310 = scalar_select %p309, %s308, 3
        %s311 = smul.addr %s310, 4
        %s312 = scalar_lea.vmem %s2, %s311
        %p313 = scmp.lt.s32.totalorder %s18, 1
        %s314 = scalar_select %p313, %s18, 1
        %s315 = smul.addr %s314, 2
        %s316 = scalar_lea.vmem %s3, %s315
        // Predicated region
        $region33: #{bottleneck_forward.4} parent=27 // pred_check
          %p317 = pneg %p83
        $region34: #{bottleneck_forward.4} parent=27 // pred_check_branch
          %319 = sbr.rel (%p317) target = $region36
        $region35: #{bottleneck_forward.4} parent=27 // pred_region
          %s320 = smul.u32 2, %s18
        $region36: #{bottleneck_forward.4} parent=27 // pred_fallthru
          _
        // Predicated region
        $region37: #{bottleneck_forward.4} parent=27 // pred_check
          %p321 = pneg %p109
        $region38: #{bottleneck_forward.4} parent=27 // pred_check_branch
          %323 = sbr.rel (%p321) target = $region40
        $region39: #{bottleneck_forward.4} parent=27 // pred_region
          _
        $region40: #{bottleneck_forward.4} parent=27 // pred_fallthru
          _
      $region28: #{bottleneck_forward.4} parent=5 // pred_fallthru
        _
      %p324 = scmp.le.s32.totalorder 2, %s13
      // Predicated region
      $region41: #{bottleneck_forward.4} parent=5 // pred_check
        %p325 = pneg %p324
      $region42: #{bottleneck_forward.4} parent=5 // pred_check_branch
        %327 = sbr.rel (%p325) target = $region44
      $region43: #{bottleneck_forward.4} parent=5 // pred_region
        %s328 = ssub.s32 %s13, 2
        // Predicated region
        $region45: #{bottleneck_forward.4} parent=43 // pred_check
          %p329 = pneg %p89
        $region46: #{bottleneck_forward.4} parent=43 // pred_check_branch
          %331 = sbr.rel (%p329) target = $region48
        $region47: #{bottleneck_forward.4} parent=43 // pred_region
          %s332 = smul.u32 2, %s19
          %p333 = scmp.lt.s32.totalorder %s332, 3
          %s334 = scalar_select %p333, %s332, 3
          %s335 = smul.addr %s334, 4
          %s336 = scalar_lea.vmem %s2, %s335
        $region48: #{bottleneck_forward.4} parent=43 // pred_fallthru
          _
        // Predicated region
        $region49: #{bottleneck_forward.4} parent=43 // pred_check
          %p337 = pneg %p115
        $region50: #{bottleneck_forward.4} parent=43 // pred_check_branch
          %339 = sbr.rel (%p337) target = $region52
        $region51: #{bottleneck_forward.4} parent=43 // pred_region
          %p340 = scmp.lt.s32.totalorder %s19, 1
          %s341 = scalar_select %p340, %s19, 1
          %s342 = smul.addr %s341, 2
          %s343 = scalar_lea.vmem %s3, %s342
        $region52: #{bottleneck_forward.4} parent=43 // pred_fallthru
          _
      $region44: #{bottleneck_forward.4} parent=5 // pred_fallthru
        _
    $region6: #{bottleneck_forward.4} parent=1 // loop_footer
      %s17 = sadd.s32 1, %s13
    $region7: #{bottleneck_forward.4} parent=1 // loop_footer_branch
      %12 = sbr.rel target = $region3
    $region8: #{bottleneck_forward.4} parent=1 // loop_exit
      _
    %344 = vsyncpa [#allocation3], 1
    %s345 = scalar_lea.sflag [#allocation3], 1
    %346 = vsyncpa %s345, 1

// kernel: bottleneck_forward.7
$region0: #{bottleneck_forward.7}
  #allocation0 [shape = 'u32[]', space=smem, size = 0x4, offset = 0x4, fixed_abs, tag = 'smem constant byte address 0x4 - core index']
  #allocation1 [shape = 'u32[72,128]{1,0:T(1,128)}', space=vmem, size = 0x9000, scoped, tag = 'internal scratch']
  %s0 = inlined_call_operand.vmem [shape: bf16[4,32,128], index: 0, kind: input, shape index: {}]
  %s1 = inlined_call_operand.hbm [shape: f32[4,32,128], index: 1, kind: input, shape index: {}]
  %s2 = inlined_call_operand.vmem [shape: f32[32,1], index: 2, kind: input, shape index: {}]
  %s3 = inlined_call_operand.vmem [shape: f32[32,1], index: 3, kind: input, shape index: {}]
  %s4 = inlined_call_operand.hbm [shape: f32[4,32,128], index: 4, kind: output, shape index: {}]
  %s5 = sld [smem:[#allocation0]]
  $region53: #{bottleneck_forward.7} parent=0
    _
  %s7 = ssub.s32 1, %s5
  %s8 = scalar_select 0, %s7, %s5
  $region1: #{bottleneck_forward.7} parent=0
    #allocation2 [shape = 'u8[65536]{0}', space=vmem, size = 0x10000, scoped, tag = 'input window, operand 1']
    #allocation3 [shape = 's32[2]{0}', space=sflag, size = 0x8, scoped, tag = 'scoped memory for bottleneck_forward.7']
    #allocation4 [shape = 's32[2]{0}', space=sflag, size = 0x8, scoped, tag = 'scoped memory for bottleneck_forward.7']
    #allocation5 [shape = 'u8[65536]{0}', space=vmem, size = 0x10000, scoped, tag = 'output window, operand 0']
    %9 = vsyncpa [#allocation3], 0
    %s10 = scalar_lea.sflag [#allocation3], 1
    %11 = vsyncpa %s10, 0
    %12 = vsyncpa [#allocation4], 0
    %s13 = scalar_lea.sflag [#allocation4], 1
    %14 = vsyncpa %s13, 0
    loop: start=0, step=1, limit=4
    $region2: #{bottleneck_forward.7} parent=1 // loop_pre_header
      _
    $region3: #{bottleneck_forward.7} parent=1 // loop_header
      %s16 = sphi 0, %s20
      %p17 = scmp.ge.s32.totalorder %s16, 4
      %s26 = sphi 0, %s28
      %s29 = sphi 0, %s26
      %s30 = sphi 0, %s29
      %s46 = sphi 0, %s30
      %s52 = sphi 0, %s54
      %s55 = sphi 0, %s52
      %s56 = sphi 0, %s55
      %s72 = sphi 0, %s56
      %s76 = sphi 0, %s76
      %s78 = sphi 0, %s76
      %s79 = sphi 0, %s78
      %s93 = sphi 0, %s79
      %s97 = sphi 0, %s97
      %s99 = sphi 0, %s97
      %s100 = sphi 0, %s99
      %s114 = sphi 0, %s100
      %s120 = sphi 0, %s122
      %s123 = sphi 0, %s120
      %s124 = sphi 0, %s123
      %s140 = sphi 0, %s124
    $region4: #{bottleneck_forward.7} parent=1 // loop_header_branch
      %19 = sbr.rel (%p17) target = $region8
    $region5: #{bottleneck_forward.7} parent=1 // loop_body
      %s21 = ssub.s32 %s16, 1
      %s22 = ssub.s32 %s16, 2
      %s23 = sadd.s32 %s16, 1
      %s24 = ssub.s32 %s16, %s23
      %p25 = scmp.eq.s32.totalorder %s24, 0
      %s27 = sadd.s32 %s26, 1
      %s28 = scalar_select %p25, %s26, %s27
      %p31 = pneg %p25
      %p32 = scmp.eq.s32.totalorder %s16, 1
      %p33 = por %p31, %p32
      %p34 = scmp.ne.s32.totalorder %s26, %s29
      %p35 = scmp.eq.s32.totalorder %s16, 0
      %p36 = por %p34, %p35
      %p37 = scmp.ne.s32.totalorder %s26, %s29
      %p38 = scmp.eq.s32.totalorder %s21, 1
      %p39 = por %p37, %p38
      %p40 = scmp.ne.s32.totalorder %s29, %s30
      %p41 = scmp.eq.s32.totalorder %s21, 0
      %p42 = por %p40, %p41
      %p43 = scmp.ne.s32.totalorder %s29, %s30
      %p44 = scmp.eq.s32.totalorder %s22, 1
      %p45 = por %p43, %p44
      %p47 = scmp.ne.s32.totalorder %s30, %s46
      %p48 = scmp.eq.s32.totalorder %s22, 0
      %p49 = por %p47, %p48
      %s50 = ssub.s32 %s16, %s23
      %p51 = scmp.eq.s32.totalorder %s50, 0
      %s53 = sadd.s32 %s52, 1
      %s54 = scalar_select %p51, %s52, %s53
      %p57 = pneg %p51
      %p58 = scmp.eq.s32.totalorder %s16, 1
      %p59 = por %p57, %p58
      %p60 = scmp.ne.s32.totalorder %s52, %s55
      %p61 = scmp.eq.s32.totalorder %s16, 0
      %p62 = por %p60, %p61
      %p63 = scmp.ne.s32.totalorder %s52, %s55
      %p64 = scmp.eq.s32.totalorder %s21, 1
      %p65 = por %p63, %p64
      %p66 = scmp.ne.s32.totalorder %s55, %s56
      %p67 = scmp.eq.s32.totalorder %s21, 0
      %p68 = por %p66, %p67
      %p69 = scmp.ne.s32.totalorder %s55, %s56
      %p70 = scmp.eq.s32.totalorder %s22, 1
      %p71 = por %p69, %p70
      %p73 = scmp.ne.s32.totalorder %s56, %s72
      %p74 = scmp.eq.s32.totalorder %s22, 0
      %p75 = por %p73, %p74
      %s77 = sadd.s32 %s76, 1
      %p80 = scmp.eq.s32.totalorder %s16, 1
      %p81 = scmp.ne.s32.totalorder %s76, %s78
      %p82 = scmp.eq.s32.totalorder %s16, 0
      %p83 = por %p81, %p82
      %p84 = scmp.ne.s32.totalorder %s76, %s78
      %p85 = scmp.eq.s32.totalorder %s21, 1
      %p86 = por %p84, %p85
      %p87 = scmp.ne.s32.totalorder %s78, %s79
      %p88 = scmp.eq.s32.totalorder %s21, 0
      %p89 = por %p87, %p88
      %p90 = scmp.ne.s32.totalorder %s78, %s79
      %p91 = scmp.eq.s32.totalorder %s22, 1
      %p92 = por %p90, %p91
      %p94 = scmp.ne.s32.totalorder %s79, %s93
      %p95 = scmp.eq.s32.totalorder %s22, 0
      %p96 = por %p94, %p95
      %s98 = sadd.s32 %s97, 1
      %p101 = scmp.eq.s32.totalorder %s16, 1
      %p102 = scmp.ne.s32.totalorder %s97, %s99
      %p103 = scmp.eq.s32.totalorder %s16, 0
      %p104 = por %p102, %p103
      %p105 = scmp.ne.s32.totalorder %s97, %s99
      %p106 = scmp.eq.s32.totalorder %s21, 1
      %p107 = por %p105, %p106
      %p108 = scmp.ne.s32.totalorder %s99, %s100
      %p109 = scmp.eq.s32.totalorder %s21, 0
      %p110 = por %p108, %p109
      %p111 = scmp.ne.s32.totalorder %s99, %s100
      %p112 = scmp.eq.s32.totalorder %s22, 1
      %p113 = por %p111, %p112
      %p115 = scmp.ne.s32.totalorder %s100, %s114
      %p116 = scmp.eq.s32.totalorder %s22, 0
      %p117 = por %p115, %p116
      %s118 = ssub.s32 %s16, %s23
      %p119 = scmp.eq.s32.totalorder %s118, 0
      %s121 = sadd.s32 %s120, 1
      %s122 = scalar_select %p119, %s120, %s121
      %p125 = pneg %p119
      %p126 = scmp.eq.s32.totalorder %s16, 1
      %p127 = por %p125, %p126
      %p128 = scmp.ne.s32.totalorder %s120, %s123
      %p129 = scmp.eq.s32.totalorder %s16, 0
      %p130 = por %p128, %p129
      %p131 = scmp.ne.s32.totalorder %s120, %s123
      %p132 = scmp.eq.s32.totalorder %s21, 1
      %p133 = por %p131, %p132
      %p134 = scmp.ne.s32.totalorder %s123, %s124
      %p135 = scmp.eq.s32.totalorder %s21, 0
      %p136 = por %p134, %p135
      %p137 = scmp.ne.s32.totalorder %s123, %s124
      %p138 = scmp.eq.s32.totalorder %s22, 1
      %p139 = por %p137, %p138
      %p141 = scmp.ne.s32.totalorder %s124, %s140
      %p142 = scmp.eq.s32.totalorder %s22, 0
      %p143 = por %p141, %p142
      %p144 = scmp.le.s32.totalorder 1, %s16
      %p145 = scmp.lt.s32.totalorder %s16, 3
      %p146 = pnand %p144, %p145
      %p147 = pneg %p146
      // Predicated region
      $region9: #{bottleneck_forward.7} parent=5 // pred_check
        _
      $region10: #{bottleneck_forward.7} parent=5 // pred_check_branch
        %149 = sbr.rel (%p146) target = $region12
      $region11: #{bottleneck_forward.7} parent=5 // pred_region
        %s150 = ssub.s32 %s16, 1
        // Predicated region
        $region13: #{bottleneck_forward.7} parent=11 // pred_check
          %p151 = pneg %p89
        $region14: #{bottleneck_forward.7} parent=11 // pred_check_branch
          %153 = sbr.rel (%p151) target = $region16
        $region15: #{bottleneck_forward.7} parent=11 // pred_region
          _
        $region16: #{bottleneck_forward.7} parent=11 // pred_fallthru
          _
        // Predicated region
        $region17: #{bottleneck_forward.7} parent=11 // pred_check
          %p154 = pneg %p110
        $region18: #{bottleneck_forward.7} parent=11 // pred_check_branch
          %156 = sbr.rel (%p154) target = $region20
        $region19: #{bottleneck_forward.7} parent=11 // pred_region
          _
        $region20: #{bottleneck_forward.7} parent=11 // pred_fallthru
          _
      $region12: #{bottleneck_forward.7} parent=5 // pred_fallthru
        _
      %p157 = scmp.lt.s32.totalorder %s16, 2
      // Predicated region
      $region21: #{bottleneck_forward.7} parent=5 // pred_check
        %p158 = pneg %p157
      $region22: #{bottleneck_forward.7} parent=5 // pred_check_branch
        %160 = sbr.rel (%p158) target = $region24
      $region23: #{bottleneck_forward.7} parent=5 // pred_region
        // Predicated region
        $region25: #{bottleneck_forward.7} parent=23 // pred_check
          %p161 = pneg %p36
        $region26: #{bottleneck_forward.7} parent=23 // pred_check_branch
          %163 = sbr.rel (%p161) target = $region28
        $region27: #{bottleneck_forward.7} parent=23 // pred_region
          %s164 = smul.u32 2, %s16
          %p165 = scmp.lt.s32.totalorder %s164, 3
          %s166 = scalar_select %p165, %s164, 3
          %s167 = smul.addr %s166, 4
          %s168 = smul.addr %s167, 4
          %s169 = scalar_lea.vmem %s0, %s168
          %s170 = smul.u32 2, %s16
        $region28: #{bottleneck_forward.7} parent=23 // pred_fallthru
          _
        // Predicated region
        $region29: #{bottleneck_forward.7} parent=23 // pred_check
          %p171 = pneg %p62
        $region30: #{bottleneck_forward.7} parent=23 // pred_check_branch
          %173 = sbr.rel (%p171) target = $region32
        $region31: #{bottleneck_forward.7} parent=23 // pred_region
          %s174 = sand.u32 %s52, 1
          %s175 = scalar_lea.sflag [#allocation3], %s174
          %s176 = sand.u32 %s52, 1
          %s177 = smul.addr %s176, 64
          %s178 = scalar_lea.vmem [#allocation2], %s177
          %s179 = smul.u32 2, %s16
          %181 = vsyncadd %s175, 0
          %s182 = smul.addr %s179, 4
          %s183 = smul.addr %s182, 8
          %s184 = scalar_lea.hbm %s1, %s183
          %s185 = sshll.u32 %s184, 4
          %s186 = int_to_ptr.hbm [resolvable:$true] %s185
          %s187 = sshll.u32 %s178, 4
          %s188 = int_to_ptr.vmem [resolvable:$true] %s187
          %193 = dma.hbm_to_vmem [thread:$0]  %s186, 1024, %s188, %s175, 128, 128, 8
        $region32: #{bottleneck_forward.7} parent=23 // pred_fallthru
          _
      $region24: #{bottleneck_forward.7} parent=5 // pred_fallthru
        _
      %p194 = scmp.le.s32.totalorder 1, %s16
      %p195 = scmp.lt.s32.totalorder %s16, 3
      %p196 = pnand %p194, %p195
      %p197 = pneg %p196
      // Predicated region
      $region33: #{bottleneck_forward.7} parent=5 // pred_check
        _
      $region34: #{bottleneck_forward.7} parent=5 // pred_check_branch
        %199 = sbr.rel (%p196) target = $region36
      $region35: #{bottleneck_forward.7} parent=5 // pred_region
        %s200 = ssub.s32 %s16, 1
        %s201 = sand.u32 %s55, 1
        %s202 = scalar_lea.sflag [#allocation3], %s201
        %s203 = sand.u32 %s55, 1
        %s204 = smul.addr %s203, 64
        %s205 = scalar_lea.vmem [#allocation2], %s204
        // Predicated region
        $region37: #{bottleneck_forward.7} parent=35 // pred_check
          %p206 = pneg %p68
        $region38: #{bottleneck_forward.7} parent=35 // pred_check_branch
          %208 = sbr.rel (%p206) target = $region40
        $region39: #{bottleneck_forward.7} parent=35 // pred_region
          %210 = dma.done %s202, 1024
        $region40: #{bottleneck_forward.7} parent=35 // pred_fallthru
          _
        %s211 = smul.u32 2, %s21
        %p212 = scmp.lt.s32.totalorder %s211, 3
        %s213 = scalar_select %p212, %s211, 3
        %s214 = smul.addr %s213, 4
        %s215 = smul.addr %s214, 4
        %s216 = scalar_lea.vmem %s0, %s215
        %p217 = pneg %p42
        %p218 = pneg %p39
        %s219 = sand.u32 %s55, 1
        %s220 = scalar_lea.sflag [#allocation3], %s219
        %s221 = sand.u32 %s55, 1
        %s222 = smul.addr %s221, 64
        %s223 = scalar_lea.vmem [#allocation2], %s222
        %p224 = pneg %p68
        %p225 = pneg %p65
        %p226 = pneg %p89
        %p227 = pneg %p86
        %p228 = pneg %p110
        %p229 = pneg %p107
        %p230 = pneg %p136
        %p231 = pneg %p133
        %s232 = sand.u32 %s123, 1
        %s233 = scalar_lea.sflag [#allocation4], %s232
        %s234 = sand.u32 %s123, 1
        %s235 = smul.addr %s234, 64
        %s236 = scalar_lea.vmem [#allocation5], %s235
        %s237 = smul.u32 2, %s21
        %p238 = scmp.lt.s32.totalorder %s237, 3
        %s239 = scalar_select %p238, %s237, 3
        %s240 = smul.addr %s239, 4
        %s241 = smul.addr %s240, 4
        %s242 = scalar_lea.vmem %s0, %s241
        %s243 = smul.u32 2, %s21
        %s244 = smul.u32 2, %s21
        %s245 = smul.u32 2, %s21
        %v246 = vld [vmem:[%s2] sm:$0xff]
        %v247 = vld [vmem:[%s2 + $0x8] sm:$0xff]
        %v248 = vld [vmem:[%s2 + $0x10] sm:$0xff]
        %v249 = vld [vmem:[%s2 + $0x18] sm:$0xff]
        %v250 = vld [vmem:[%s3] sm:$0xff]
        %v251 = vld [vmem:[%s3 + $0x8] sm:$0xff]
        %v252 = vld [vmem:[%s3 + $0x10] sm:$0xff]
        %v253 = vld [vmem:[%s3 + $0x18] sm:$0xff]
        %v254 = vld [vmem:[%s242] sm:$0xf]
        %v255 = vld [vmem:[%s242 + $0x4] sm:$0xf]
        %v256 = vld [vmem:[%s242 + $0x8] sm:$0xf]
        %v257 = vld [vmem:[%s242 + $0xc] sm:$0xf]
        %v258 = vunpack.c.l.bf16 %v254
        %v259 = vunpack.c.l.bf16 %v255
        %v260 = vunpack.c.l.bf16 %v256
        %v261 = vunpack.c.l.bf16 %v257
        %263 = vset.pattern.permute.xlu0 0
        %264 = vperm.xlu0 %263, %v246
        %v265 = vpop.permute.xlu0 %264
        %268 = vset.pattern.permute.xlu0 0
        %269 = vperm.xlu0 %268, %v247
        %v270 = vpop.permute.xlu0 %269
        %273 = vset.pattern.permute.xlu0 0
        %274 = vperm.xlu0 %273, %v248
        %v275 = vpop.permute.xlu0 %274
        %278 = vset.pattern.permute.xlu0 0
        %279 = vperm.xlu0 %278, %v249
        %v280 = vpop.permute.xlu0 %279
        %v282 = vmul.f32 %v258, %v265
        %v283 = vmul.f32 %v259, %v270
        %v284 = vmul.f32 %v260, %v275
        %v285 = vmul.f32 %v261, %v280
        %287 = vset.pattern.permute.xlu0 0
        %288 = vperm.xlu0 %287, %v250
        %v289 = vpop.permute.xlu0 %288
        %292 = vset.pattern.permute.xlu0 0
        %293 = vperm.xlu0 %292, %v251
        %v294 = vpop.permute.xlu0 %293
        %297 = vset.pattern.permute.xlu0 0
        %298 = vperm.xlu0 %297, %v252
        %v299 = vpop.permute.xlu0 %298
        %302 = vset.pattern.permute.xlu0 0
        %303 = vperm.xlu0 %302, %v253
        %v304 = vpop.permute.xlu0 %303
        %v306 = vadd.f32 %v282, %v289
        %v307 = vadd.f32 %v283, %v294
        %v308 = vadd.f32 %v284, %v299
        %v309 = vadd.f32 %v285, %v304
        %v310 = vld [vmem:[%s205] sm:$0xff]
        %v311 = vld [vmem:[%s205 + $0x8] sm:$0xff]
        %v312 = vld [vmem:[%s205 + $0x10] sm:$0xff]
        %v313 = vld [vmem:[%s205 + $0x18] sm:$0xff]
        %v314 = vadd.f32 %v306, %v310
        %v315 = vadd.f32 %v307, %v311
        %v316 = vadd.f32 %v308, %v312
        %v317 = vadd.f32 %v309, %v313
        %v318 = vmax.f32 %v314, 0.0
        %v319 = vmax.f32 %v315, 0.0
        %v320 = vmax.f32 %v316, 0.0
        %v321 = vmax.f32 %v317, 0.0
        %322 = vst [vmem:[%s236] sm:$0xff] %v318
        %323 = vst [vmem:[%s236 + $0x8] sm:$0xff] %v319
        %324 = vst [vmem:[%s236 + $0x10] sm:$0xff] %v320
        %325 = vst [vmem:[%s236 + $0x18] sm:$0xff] %v321
        %s326 = scalar_lea.vmem %s242, 16
        %v327 = vld [vmem:[%s326] sm:$0xf]
        %v328 = vld [vmem:[%s326 + $0x4] sm:$0xf]
        %v329 = vld [vmem:[%s326 + $0x8] sm:$0xf]
        %v330 = vld [vmem:[%s326 + $0xc] sm:$0xf]
        %v331 = vunpack.c.l.bf16 %v327
        %v332 = vunpack.c.l.bf16 %v328
        %v333 = vunpack.c.l.bf16 %v329
        %v334 = vunpack.c.l.bf16 %v330
        %v335 = vmul.f32 %v331, %v265
        %v336 = vmul.f32 %v332, %v270
        %v337 = vmul.f32 %v333, %v275
        %v338 = vmul.f32 %v334, %v280
        %v339 = vadd.f32 %v335, %v289
        %v340 = vadd.f32 %v336, %v294
        %v341 = vadd.f32 %v337, %v299
        %v342 = vadd.f32 %v338, %v304
        %s343 = scalar_lea.vmem %s205, 32 [#allocation2]
        %v344 = vld [vmem:[%s343] sm:$0xff]
        %v345 = vld [vmem:[%s343 + $0x8] sm:$0xff]
        %v346 = vld [vmem:[%s343 + $0x10] sm:$0xff]
        %v347 = vld [vmem:[%s343 + $0x18] sm:$0xff]
        %v348 = vadd.f32 %v339, %v344
        %v349 = vadd.f32 %v340, %v345
        %v350 = vadd.f32 %v341, %v346
        %v351 = vadd.f32 %v342, %v347
        %v352 = vmax.f32 %v348, 0.0
        %v353 = vmax.f32 %v349, 0.0
        %v354 = vmax.f32 %v350, 0.0
        %v355 = vmax.f32 %v351, 0.0
        %s356 = scalar_lea.vmem %s236, 32 [#allocation5]
        %357 = vst [vmem:[%s356] sm:$0xff] %v352
        %358 = vst [vmem:[%s356 + $0x8] sm:$0xff] %v353
        %359 = vst [vmem:[%s356 + $0x10] sm:$0xff] %v354
        %360 = vst [vmem:[%s356 + $0x18] sm:$0xff] %v355
        %s361 = sand.u32 %s123, 1
        %s362 = scalar_lea.sflag [#allocation4], %s361
        %s363 = sand.u32 %s123, 1
        %s364 = smul.addr %s363, 64
        %s365 = scalar_lea.vmem [#allocation5], %s364
        // Predicated region
        $region41: #{bottleneck_forward.7} parent=35 // pred_check
          %p366 = pneg %p133
        $region42: #{bottleneck_forward.7} parent=35 // pred_check_branch
          %368 = sbr.rel (%p366) target = $region44
        $region43: #{bottleneck_forward.7} parent=35 // pred_region
          %s369 = smul.u32 2, %s21
          %371 = vsyncadd %s362, 0
          %s372 = smul.addr %s369, 4
          %s373 = smul.addr %s372, 8
          %s374 = scalar_lea.hbm %s4, %s373
          %s375 = sshll.u32 %s365, 4
          %s376 = int_to_ptr.vmem [resolvable:$true] %s375
          %s377 = sshll.u32 %s374, 4
          %s378 = int_to_ptr.hbm [resolvable:$true] %s377
          %383 = dma.vmem_to_hbm [thread:$0]  %s376, 1024, %s378, %s362, 128, 128, 8
        $region44: #{bottleneck_forward.7} parent=35 // pred_fallthru
          _
      $region36: #{bottleneck_forward.7} parent=5 // pred_fallthru
        _
      %p384 = scmp.le.s32.totalorder 2, %s16
      // Predicated region
      $region45: #{bottleneck_forward.7} parent=5 // pred_check
        %p385 = pneg %p384
      $region46: #{bottleneck_forward.7} parent=5 // pred_check_branch
        %387 = sbr.rel (%p385) target = $region48
      $region47: #{bottleneck_forward.7} parent=5 // pred_region
        %s388 = ssub.s32 %s16, 2
        // Predicated region
        $region49: #{bottleneck_forward.7} parent=47 // pred_check
          %p389 = pneg %p139
        $region50: #{bottleneck_forward.7} parent=47 // pred_check_branch
          %391 = sbr.rel (%p389) target = $region52
        $region51: #{bottleneck_forward.7} parent=47 // pred_region
          %s392 = sand.u32 %s124, 1
          %s393 = scalar_lea.sflag [#allocation4], %s392
          %s394 = sand.u32 %s124, 1
          %s395 = smul.addr %s394, 64
          %s396 = scalar_lea.vmem [#allocation5], %s395
          %398 = dma.done %s393, 1024
        $region52: #{bottleneck_forward.7} parent=47 // pred_fallthru
          _
      $region48: #{bottleneck_forward.7} parent=5 // pred_fallthru
        _
    $region6: #{bottleneck_forward.7} parent=1 // loop_footer
      %s20 = sadd.s32 1, %s16
    $region7: #{bottleneck_forward.7} parent=1 // loop_footer_branch
      %15 = sbr.rel target = $region3
    $region8: #{bottleneck_forward.7} parent=1 // loop_exit
      _
    %399 = vsyncpa [#allocation3], 1
    %s400 = scalar_lea.sflag [#allocation3], 1
    %401 = vsyncpa %s400, 1
    %402 = vsyncpa [#allocation4], 1
    %s403 = scalar_lea.sflag [#allocation4], 1
    %404 = vsyncpa %s403, 1

// kernel: bottleneck_forward.6
$region0: #{bottleneck_forward.6}
  #allocation0 [shape = 'u32[]', space=smem, size = 0x4, offset = 0x4, fixed_abs, tag = 'smem constant byte address 0x4 - core index']
  #allocation1 [shape = 'u32[72,128]{1,0:T(1,128)}', space=vmem, size = 0x9000, scoped, tag = 'internal scratch']
  %s0 = inlined_call_operand.vmem [shape: bf16[4,8,128], index: 0, kind: input, shape index: {}]
  %s1 = inlined_call_operand.vmem [shape: bf16[32,8], index: 1, kind: input, shape index: {}]
  %s2 = inlined_call_operand.vmem [shape: f32[8,1], index: 2, kind: input, shape index: {}]
  %s3 = inlined_call_operand.vmem [shape: f32[8,1], index: 3, kind: input, shape index: {}]
  %s4 = inlined_call_operand.vmem [shape: bf16[4,32,128], index: 4, kind: output, shape index: {0}]
  %s5 = inlined_call_operand.vmem [shape: f32[2,2,32], index: 5, kind: output, shape index: {1}]
  %6 = xla_tuple %s4, %s5
  %s7 = sld [smem:[#allocation0]]
  $region57: #{bottleneck_forward.6} parent=0
    _
  %s9 = ssub.s32 1, %s7
  %s10 = scalar_select 0, %s9, %s7
  loop: start=0, step=1, limit=4
  $region2: #{bottleneck_forward.6} parent=0 // loop_pre_header
    _
  $region3: #{bottleneck_forward.6} parent=0 // loop_header
    %s12 = sphi 0, %s16
    %p13 = scmp.ge.s32.totalorder %s12, 4
    %s22 = sphi 0, %s24
    %s25 = sphi 0, %s22
    %s26 = sphi 0, %s25
    %s42 = sphi 0, %s26
    %s46 = sphi 0, %s46
    %s48 = sphi 0, %s46
    %s49 = sphi 0, %s48
    %s63 = sphi 0, %s49
    %s67 = sphi 0, %s67
    %s69 = sphi 0, %s67
    %s70 = sphi 0, %s69
    %s84 = sphi 0, %s70
    %s88 = sphi 0, %s88
    %s90 = sphi 0, %s88
    %s91 = sphi 0, %s90
    %s105 = sphi 0, %s91
    %s111 = sphi 0, %s113
    %s114 = sphi 0, %s111
    %s115 = sphi 0, %s114
    %s131 = sphi 0, %s115
    %s137 = sphi 0, %s139
    %s140 = sphi 0, %s137
    %s141 = sphi 0, %s140
    %s157 = sphi 0, %s141
  $region4: #{bottleneck_forward.6} parent=0 // loop_header_branch
    %15 = sbr.rel (%p13) target = $region8
  $region5: #{bottleneck_forward.6} parent=0 // loop_body
    %s17 = ssub.s32 %s12, 1
    %s18 = ssub.s32 %s12, 2
    %s19 = sadd.s32 %s12, 1
    %s20 = ssub.s32 %s12, %s19
    %p21 = scmp.eq.s32.totalorder %s20, 0
    %s23 = sadd.s32 %s22, 1
    %s24 = scalar_select %p21, %s22, %s23
    %p27 = pneg %p21
    %p28 = scmp.eq.s32.totalorder %s12, 1
    %p29 = por %p27, %p28
    %p30 = scmp.ne.s32.totalorder %s22, %s25
    %p31 = scmp.eq.s32.totalorder %s12, 0
    %p32 = por %p30, %p31
    %p33 = scmp.ne.s32.totalorder %s22, %s25
    %p34 = scmp.eq.s32.totalorder %s17, 1
    %p35 = por %p33, %p34
    %p36 = scmp.ne.s32.totalorder %s25, %s26
    %p37 = scmp.eq.s32.totalorder %s17, 0
    %p38 = por %p36, %p37
    %p39 = scmp.ne.s32.totalorder %s25, %s26
    %p40 = scmp.eq.s32.totalorder %s18, 1
    %p41 = por %p39, %p40
    %p43 = scmp.ne.s32.totalorder %s26, %s42
    %p44 = scmp.eq.s32.totalorder %s18, 0
    %p45 = por %p43, %p44
    %s47 = sadd.s32 %s46, 1
    %p50 = scmp.eq.s32.totalorder %s12, 1
    %p51 = scmp.ne.s32.totalorder %s46, %s48
    %p52 = scmp.eq.s32.totalorder %s12, 0
    %p53 = por %p51, %p52
    %p54 = scmp.ne.s32.totalorder %s46, %s48
    %p55 = scmp.eq.s32.totalorder %s17, 1
    %p56 = por %p54, %p55
    %p57 = scmp.ne.s32.totalorder %s48, %s49
    %p58 = scmp.eq.s32.totalorder %s17, 0
    %p59 = por %p57, %p58
    %p60 = scmp.ne.s32.totalorder %s48, %s49
    %p61 = scmp.eq.s32.totalorder %s18, 1
    %p62 = por %p60, %p61
    %p64 = scmp.ne.s32.totalorder %s49, %s63
    %p65 = scmp.eq.s32.totalorder %s18, 0
    %p66 = por %p64, %p65
    %s68 = sadd.s32 %s67, 1
    %p71 = scmp.eq.s32.totalorder %s12, 1
    %p72 = scmp.ne.s32.totalorder %s67, %s69
    %p73 = scmp.eq.s32.totalorder %s12, 0
    %p74 = por %p72, %p73
    %p75 = scmp.ne.s32.totalorder %s67, %s69
    %p76 = scmp.eq.s32.totalorder %s17, 1
    %p77 = por %p75, %p76
    %p78 = scmp.ne.s32.totalorder %s69, %s70
    %p79 = scmp.eq.s32.totalorder %s17, 0
    %p80 = por %p78, %p79
    %p81 = scmp.ne.s32.totalorder %s69, %s70
    %p82 = scmp.eq.s32.totalorder %s18, 1
    %p83 = por %p81, %p82
    %p85 = scmp.ne.s32.totalorder %s70, %s84
    %p86 = scmp.eq.s32.totalorder %s18, 0
    %p87 = por %p85, %p86
    %s89 = sadd.s32 %s88, 1
    %p92 = scmp.eq.s32.totalorder %s12, 1
    %p93 = scmp.ne.s32.totalorder %s88, %s90
    %p94 = scmp.eq.s32.totalorder %s12, 0
    %p95 = por %p93, %p94
    %p96 = scmp.ne.s32.totalorder %s88, %s90
    %p97 = scmp.eq.s32.totalorder %s17, 1
    %p98 = por %p96, %p97
    %p99 = scmp.ne.s32.totalorder %s90, %s91
    %p100 = scmp.eq.s32.totalorder %s17, 0
    %p101 = por %p99, %p100
    %p102 = scmp.ne.s32.totalorder %s90, %s91
    %p103 = scmp.eq.s32.totalorder %s18, 1
    %p104 = por %p102, %p103
    %p106 = scmp.ne.s32.totalorder %s91, %s105
    %p107 = scmp.eq.s32.totalorder %s18, 0
    %p108 = por %p106, %p107
    %s109 = ssub.s32 %s12, %s19
    %p110 = scmp.eq.s32.totalorder %s109, 0
    %s112 = sadd.s32 %s111, 1
    %s113 = scalar_select %p110, %s111, %s112
    %p116 = pneg %p110
    %p117 = scmp.eq.s32.totalorder %s12, 1
    %p118 = por %p116, %p117
    %p119 = scmp.ne.s32.totalorder %s111, %s114
    %p120 = scmp.eq.s32.totalorder %s12, 0
    %p121 = por %p119, %p120
    %p122 = scmp.ne.s32.totalorder %s111, %s114
    %p123 = scmp.eq.s32.totalorder %s17, 1
    %p124 = por %p122, %p123
    %p125 = scmp.ne.s32.totalorder %s114, %s115
    %p126 = scmp.eq.s32.totalorder %s17, 0
    %p127 = por %p125, %p126
    %p128 = scmp.ne.s32.totalorder %s114, %s115
    %p129 = scmp.eq.s32.totalorder %s18, 1
    %p130 = por %p128, %p129
    %p132 = scmp.ne.s32.totalorder %s115, %s131
    %p133 = scmp.eq.s32.totalorder %s18, 0
    %p134 = por %p132, %p133
    %s135 = ssub.s32 %s12, %s19
    %p136 = scmp.eq.s32.totalorder %s135, 0
    %s138 = sadd.s32 %s137, 1
    %s139 = scalar_select %p136, %s137, %s138
    %p142 = pneg %p136
    %p143 = scmp.eq.s32.totalorder %s12, 1
    %p144 = por %p142, %p143
    %p145 = scmp.ne.s32.totalorder %s137, %s140
    %p146 = scmp.eq.s32.totalorder %s12, 0
    %p147 = por %p145, %p146
    %p148 = scmp.ne.s32.totalorder %s137, %s140
    %p149 = scmp.eq.s32.totalorder %s17, 1
    %p150 = por %p148, %p149
    %p151 = scmp.ne.s32.totalorder %s140, %s141
    %p152 = scmp.eq.s32.totalorder %s17, 0
    %p153 = por %p151, %p152
    %p154 = scmp.ne.s32.totalorder %s140, %s141
    %p155 = scmp.eq.s32.totalorder %s18, 1
    %p156 = por %p154, %p155
    %p158 = scmp.ne.s32.totalorder %s141, %s157
    %p159 = scmp.eq.s32.totalorder %s18, 0
    %p160 = por %p158, %p159
    %p161 = scmp.le.s32.totalorder 1, %s12
    %p162 = scmp.lt.s32.totalorder %s12, 3
    %p163 = pnand %p161, %p162
    %p164 = pneg %p163
    // Predicated region
    $region9: #{bottleneck_forward.6} parent=5 // pred_check
      _
    $region10: #{bottleneck_forward.6} parent=5 // pred_check_branch
      %166 = sbr.rel (%p163) target = $region12
    $region11: #{bottleneck_forward.6} parent=5 // pred_region
      %s167 = ssub.s32 %s12, 1
      // Predicated region
      $region13: #{bottleneck_forward.6} parent=11 // pred_check
        %p168 = pneg %p59
      $region14: #{bottleneck_forward.6} parent=11 // pred_check_branch
        %170 = sbr.rel (%p168) target = $region16
      $region15: #{bottleneck_forward.6} parent=11 // pred_region
        _
      $region16: #{bottleneck_forward.6} parent=11 // pred_fallthru
        _
      // Predicated region
      $region17: #{bottleneck_forward.6} parent=11 // pred_check
        %p171 = pneg %p80
      $region18: #{bottleneck_forward.6} parent=11 // pred_check_branch
        %173 = sbr.rel (%p171) target = $region20
      $region19: #{bottleneck_forward.6} parent=11 // pred_region
        _
      $region20: #{bottleneck_forward.6} parent=11 // pred_fallthru
        _
      // Predicated region
      $region21: #{bottleneck_forward.6} parent=11 // pred_check
        %p174 = pneg %p101
      $region22: #{bottleneck_forward.6} parent=11 // pred_check_branch
        %176 = sbr.rel (%p174) target = $region24
      $region23: #{bottleneck_forward.6} parent=11 // pred_region
        _
      $region24: #{bottleneck_forward.6} parent=11 // pred_fallthru
        _
    $region12: #{bottleneck_forward.6} parent=5 // pred_fallthru
      _
    %p177 = scmp.lt.s32.totalorder %s12, 2
    // Predicated region
    $region25: #{bottleneck_forward.6} parent=5 // pred_check
      %p178 = pneg %p177
    $region26: #{bottleneck_forward.6} parent=5 // pred_check_branch
      %180 = sbr.rel (%p178) target = $region28
    $region27: #{bottleneck_forward.6} parent=5 // pred_region
      // Predicated region
      $region29: #{bottleneck_forward.6} parent=27 // pred_check
        %p181 = pneg %p32
      $region30: #{bottleneck_forward.6} parent=27 // pred_check_branch
        %183 = sbr.rel (%p181) target = $region32
      $region31: #{bottleneck_forward.6} parent=27 // pred_region
        %s184 = smul.u32 2, %s12
        %p185 = scmp.lt.s32.totalorder %s184, 3
        %s186 = scalar_select %p185, %s184, 3
        %s187 = smul.addr %s186, 4
        %s188 = scalar_lea.vmem %s0, %s187
        %s189 = smul.u32 2, %s12
      $region32: #{bottleneck_forward.6} parent=27 // pred_fallthru
        _
    $region28: #{bottleneck_forward.6} parent=5 // pred_fallthru
      _
    %p190 = scmp.le.s32.totalorder 1, %s12
    %p191 = scmp.lt.s32.totalorder %s12, 3
    %p192 = pnand %p190, %p191
    %p193 = pneg %p192
    // Predicated region
    $region33: #{bottleneck_forward.6} parent=5 // pred_check
      _
    $region34: #{bottleneck_forward.6} parent=5 // pred_check_branch
      %195 = sbr.rel (%p192) target = $region36
    $region35: #{bottleneck_forward.6} parent=5 // pred_region
      %s196 = ssub.s32 %s12, 1
      %s197 = smul.u32 2, %s17
      %p198 = scmp.lt.s32.totalorder %s197, 3
      %s199 = scalar_select %p198, %s197, 3
      %s200 = smul.addr %s199, 4
      %s201 = scalar_lea.vmem %s0, %s200
      %p202 = pneg %p38
      %p203 = pneg %p35
      %p204 = pneg %p59
      %p205 = pneg %p56
      %p206 = pneg %p80
      %p207 = pneg %p77
      %p208 = pneg %p101
      %p209 = pneg %p98
      %p210 = pneg %p127
      %p211 = pneg %p124
      %s212 = smul.u32 2, %s17
      %p213 = scmp.lt.s32.totalorder %s212, 3
      %s214 = scalar_select %p213, %s212, 3
      %s215 = smul.addr %s214, 4
      %s216 = smul.addr %s215, 4
      %s217 = scalar_lea.vmem %s4, %s216
      %p218 = pneg %p153
      %p219 = pneg %p150
      %p220 = scmp.lt.s32.totalorder %s17, 1
      %s221 = scalar_select %p220, %s17, 1
      %s222 = smul.addr %s221, 2
      %s223 = scalar_lea.vmem %s5, %s222
      %s224 = smul.u32 2, %s17
      %p225 = scmp.lt.s32.totalorder %s224, 3
      %s226 = scalar_select %p225, %s224, 3
      %s227 = smul.addr %s226, 4
      %s228 = scalar_lea.vmem %s0, %s227
      %s229 = smul.u32 2, %s17
      %s230 = smul.u32 2, %s17
      %p231 = scmp.lt.s32.totalorder %s230, 3
      %s232 = scalar_select %p231, %s230, 3
      %s233 = smul.addr %s232, 4
      %s234 = smul.addr %s233, 4
      %s235 = scalar_lea.vmem %s4, %s234
      %s236 = smul.u32 2, %s17
      %p237 = scmp.lt.s32.totalorder %s17, 1
      %s238 = scalar_select %p237, %s17, 1
      %s239 = smul.addr %s238, 2
      %s240 = scalar_lea.vmem %s5, %s239
      %v242 = vld [vmem:[%s2] sm:$0xff]
      %v243 = vld [vmem:[%s3] sm:$0xff]
      %v244 = vld [vmem:[%s1] sm:$0xf]
      %v245 = vld [vmem:[%s1 + $0x4] sm:$0xf]
      %v246 = vld [vmem:[%s1 + $0x8] sm:$0xf]
      %v247 = vld [vmem:[%s1 + $0xc] sm:$0xf]
      %v248 = vld [vmem:[%s228] sm:$0xf]
      %v249 = vunpack.c.l.bf16 %v248
      %251 = vset.pattern.permute.xlu0 0
      %252 = vperm.xlu0 %251, %v242
      %v253 = vpop.permute.xlu0 %252
      %v255 = vmul.f32 %v249, %v253
      %257 = vset.pattern.permute.xlu0 0
      %258 = vperm.xlu0 %257, %v243
      %v259 = vpop.permute.xlu0 %258
      %v261 = vadd.f32 %v255, %v259
      %v262 = vmax.f32 %v261, 0.0
      %v263 = vpack.c.bf16 %v262, %v262
      %v268 = vunpack.c.l.b16 %v244
      %v269 = vunpack.c.l.b16 %v245
      %v270 = vunpack.c.l.b16 %v246
      %v271 = vunpack.c.l.b16 %v247
      %v272 = vpack.c.b16 %v269, %v268
      %v273 = vpack.c.b16 %v271, %v270
      %vm274 = vcmask 64512
      %v276 = vsel %vm274, %v272, 0
      %v279 = vsel %vm274, %v273, 0
      %vm281 = vcmask 1043456
      %v283 = vsel %vm281, %v263, 0
      %285 = vmatpush.bf16.msra.mxu0 0
      %286 = vmatpush.bf16.msra.mxu0 0
      %287 = vmatpush.bf16.msra.mxu0 0
      %288 = vmatpush.bf16.msra.mxu0 0
      %289 = vmatpush.bf16.msra.mxu0 0
      %290 = vmatpush.bf16.msra.mxu0 0
      %291 = vmatpush.bf16.msra.mxu0 0
      %292 = vmatpush.bf16.msra.mxu0 %v283
      %293 = vmatmul.bf16.gmra.mxu0 %v276
      %v294 = vpop.f32.mrf.mxu0
      %v295 = vadd.f32 0.0, %v294
      %v296 = vpop.f32.mrf.mxu0
      %v297 = vadd.f32 0.0, %v296
      %298 = vmatmul.bf16.gmra.mxu0 %v279
      %v299 = vpop.f32.mrf.mxu0
      %v300 = vadd.f32 0.0, %v299
      %v301 = vpop.f32.mrf.mxu0
      %v302 = vadd.f32 0.0, %v301
      %303 = vdwg.mxu0
      %v304 = vpack.c.bf16 %v295, %v295
      %v305 = vpack.c.bf16 %v297, %v297
      %v306 = vpack.c.bf16 %v300, %v300
      %v307 = vpack.c.bf16 %v302, %v302
      %308 = vst [vmem:[%s235] sm:$0xf] %v304
      %309 = vst [vmem:[%s235 + $0x4] sm:$0xf] %v305
      %310 = vst [vmem:[%s235 + $0x8] sm:$0xf] %v306
      %311 = vst [vmem:[%s235 + $0xc] sm:$0xf] %v307
      %v312 = vmul.f32 %v295, %v295
      %v313 = vmul.f32 %v297, %v297
      %v314 = vmul.f32 %v300, %v300
      %v315 = vmul.f32 %v302, %v302
      %s316 = scalar_lea.vmem %s228, 4
      %v317 = vld [vmem:[%s316] sm:$0xf]
      %v318 = vunpack.c.l.bf16 %v317
      %v319 = vmul.f32 %v318, %v253
      %v320 = vadd.f32 %v319, %v259
      %v321 = vmax.f32 %v320, 0.0
      %v322 = vpack.c.bf16 %v321, %v321
      %v324 = vsel %vm281, %v322, 0
      %326 = vmatpush.bf16.msra.mxu0 0
      %327 = vmatpush.bf16.msra.mxu0 0
      %328 = vmatpush.bf16.msra.mxu0 0
      %329 = vmatpush.bf16.msra.mxu0 0
      %330 = vmatpush.bf16.msra.mxu0 0
      %331 = vmatpush.bf16.msra.mxu0 0
      %332 = vmatpush.bf16.msra.mxu0 0
      %333 = vmatpush.bf16.msra.mxu0 %v324
      %334 = vmatmul.bf16.gmra.mxu0 %v276
      %v335 = vpop.f32.mrf.mxu0
      %v336 = vadd.f32 0.0, %v335
      %v337 = vpop.f32.mrf.mxu0
      %v338 = vadd.f32 0.0, %v337
      %339 = vmatmul.bf16.gmra.mxu0 %v279
      %v340 = vpop.f32.mrf.mxu0
      %v341 = vadd.f32 0.0, %v340
      %v342 = vpop.f32.mrf.mxu0
      %v343 = vadd.f32 0.0, %v342
      %344 = vdwg.mxu0
      %v345 = vpack.c.bf16 %v336, %v336
      %v346 = vpack.c.bf16 %v338, %v338
      %v347 = vpack.c.bf16 %v341, %v341
      %v348 = vpack.c.bf16 %v343, %v343
      %s349 = scalar_lea.vmem %s235, 16
      %350 = vst [vmem:[%s349] sm:$0xf] %v345
      %351 = vst [vmem:[%s349 + $0x4] sm:$0xf] %v346
      %352 = vst [vmem:[%s349 + $0x8] sm:$0xf] %v347
      %353 = vst [vmem:[%s349 + $0xc] sm:$0xf] %v348
      %v354 = vadd.f32 %v295, %v336
      %v355 = vadd.f32 %v297, %v338
      %v356 = vadd.f32 %v300, %v341
      %v357 = vadd.f32 %v302, %v343
      %v358 = vmul.f32 %v336, %v336
      %v359 = vmul.f32 %v338, %v338
      %v360 = vmul.f32 %v341, %v341
      %v361 = vmul.f32 %v343, %v343
      %v362 = vadd.f32 %v312, %v358
      %v363 = vadd.f32 %v313, %v359
      %v364 = vadd.f32 %v314, %v360
      %v365 = vadd.f32 %v315, %v361
      %366 = vmatpush.xpose.msra.mxu0 0.0
      %367 = vmatpush.xpose.msra.mxu0 0.0
      %368 = vmatpush.xpose.msra.mxu0 0.0
      %369 = vmatpush.xpose.msra.mxu0 0.0
      %370 = vmatpush.xpose.msra.mxu0 0.0
      %371 = vmatpush.xpose.msra.mxu0 0.0
      %372 = vmatpush.xpose.msra.mxu0 0.0
      %373 = vmatpush.xpose.msra.mxu0 0.0
      %374 = vmatpush.xpose.msra.mxu0 0.0
      %375 = vmatpush.xpose.msra.mxu0 0.0
      %376 = vmatpush.xpose.msra.mxu0 0.0
      %377 = vmatpush.xpose.msra.mxu0 0.0
      %378 = vmatpush.xpose.msra.mxu0 %v357
      %379 = vmatpush.xpose.msra.mxu0 %v356
      %380 = vmatpush.xpose.msra.mxu0 %v355
      %381 = vmatpush.xpose.msra.mxu0 %v354
      %382 = vmatmul.f32.gmra.mxu0 1.0
      %v383 = vpop.f32.mrf.mxu0
      %v384 = vadd.f32 0.0, %v383
      %385 = vdwg.mxu0
      %386 = vmatpush.xpose.msra.mxu0 0.0
      %387 = vmatpush.xpose.msra.mxu0 0.0
      %388 = vmatpush.xpose.msra.mxu0 0.0
      %389 = vmatpush.xpose.msra.mxu0 0.0
      %390 = vmatpush.xpose.msra.mxu0 0.0
      %391 = vmatpush.xpose.msra.mxu0 0.0
      %392 = vmatpush.xpose.msra.mxu0 0.0
      %393 = vmatpush.xpose.msra.mxu0 0.0
      %394 = vmatpush.xpose.msra.mxu0 0.0
      %395 = vmatpush.xpose.msra.mxu0 0.0
      %396 = vmatpush.xpose.msra.mxu0 0.0
      %397 = vmatpush.xpose.msra.mxu0 0.0
      %398 = vmatpush.xpose.msra.mxu0 %v365
      %399 = vmatpush.xpose.msra.mxu0 %v364
      %400 = vmatpush.xpose.msra.mxu0 %v363
      %401 = vmatpush.xpose.msra.mxu0 %v362
      %402 = vmatmul.f32.gmra.mxu0 1.0
      %v403 = vpop.f32.mrf.mxu0
      %v404 = vadd.f32 0.0, %v403
      %405 = vdwg.mxu0
      %v407 = vrot.slane %v404, 7
      %vm409 = vcmask 1040384
      %v410 = vsel %vm409, %v384, %v407
      %vm411 = vcmask 254976
      %412 = vst.msk [vmem:[%s240] sm:$0x3] %vm411, %v410
      %s413 = smul.u32 2, %s17
      %p414 = scmp.lt.s32.totalorder %s413, 3
      %s415 = scalar_select %p414, %s413, 3
      %s416 = smul.addr %s415, 4
      %s417 = smul.addr %s416, 4
      %s418 = scalar_lea.vmem %s4, %s417
      %p419 = scmp.lt.s32.totalorder %s17, 1
      %s420 = scalar_select %p419, %s17, 1
      %s421 = smul.addr %s420, 2
      %s422 = scalar_lea.vmem %s5, %s421
      // Predicated region
      $region37: #{bottleneck_forward.6} parent=35 // pred_check
        %p423 = pneg %p124
      $region38: #{bottleneck_forward.6} parent=35 // pred_check_branch
        %425 = sbr.rel (%p423) target = $region40
      $region39: #{bottleneck_forward.6} parent=35 // pred_region
        %s426 = smul.u32 2, %s17
      $region40: #{bottleneck_forward.6} parent=35 // pred_fallthru
        _
      // Predicated region
      $region41: #{bottleneck_forward.6} parent=35 // pred_check
        %p427 = pneg %p150
      $region42: #{bottleneck_forward.6} parent=35 // pred_check_branch
        %429 = sbr.rel (%p427) target = $region44
      $region43: #{bottleneck_forward.6} parent=35 // pred_region
        _
      $region44: #{bottleneck_forward.6} parent=35 // pred_fallthru
        _
    $region36: #{bottleneck_forward.6} parent=5 // pred_fallthru
      _
    %p430 = scmp.le.s32.totalorder 2, %s12
    // Predicated region
    $region45: #{bottleneck_forward.6} parent=5 // pred_check
      %p431 = pneg %p430
    $region46: #{bottleneck_forward.6} parent=5 // pred_check_branch
      %433 = sbr.rel (%p431) target = $region48
    $region47: #{bottleneck_forward.6} parent=5 // pred_region
      %s434 = ssub.s32 %s12, 2
      // Predicated region
      $region49: #{bottleneck_forward.6} parent=47 // pred_check
        %p435 = pneg %p130
      $region50: #{bottleneck_forward.6} parent=47 // pred_check_branch
        %437 = sbr.rel (%p435) target = $region52
      $region51: #{bottleneck_forward.6} parent=47 // pred_region
        %s438 = smul.u32 2, %s18
        %p439 = scmp.lt.s32.totalorder %s438, 3
        %s440 = scalar_select %p439, %s438, 3
        %s441 = smul.addr %s440, 4
        %s442 = smul.addr %s441, 4
        %s443 = scalar_lea.vmem %s4, %s442
      $region52: #{bottleneck_forward.6} parent=47 // pred_fallthru
        _
      // Predicated region
      $region53: #{bottleneck_forward.6} parent=47 // pred_check
        %p444 = pneg %p156
      $region54: #{bottleneck_forward.6} parent=47 // pred_check_branch
        %446 = sbr.rel (%p444) target = $region56
      $region55: #{bottleneck_forward.6} parent=47 // pred_region
        %p447 = scmp.lt.s32.totalorder %s18, 1
        %s448 = scalar_select %p447, %s18, 1
        %s449 = smul.addr %s448, 2
        %s450 = scalar_lea.vmem %s5, %s449
      $region56: #{bottleneck_forward.6} parent=47 // pred_fallthru
        _
    $region48: #{bottleneck_forward.6} parent=5 // pred_fallthru
      _
  $region6: #{bottleneck_forward.6} parent=0 // loop_footer
    %s16 = sadd.s32 1, %s12
  $region7: #{bottleneck_forward.6} parent=0 // loop_footer_branch
    %11 = sbr.rel target = $region3
  $region8: #{bottleneck_forward.6} parent=0 // loop_exit
    _

// kernel: bottleneck_forward.5
$region0: #{bottleneck_forward.5}
  #allocation0 [shape = 'u32[]', space=smem, size = 0x4, offset = 0x4, fixed_abs, tag = 'smem constant byte address 0x4 - core index']
  #allocation1 [shape = 'u32[72,128]{1,0:T(1,128)}', space=vmem, size = 0x9000, scoped, tag = 'internal scratch']
  %s0 = inlined_call_operand.vmem [shape: bf16[4,8,128], index: 0, kind: input, shape index: {}]
  %s1 = inlined_call_operand.vmem [shape: bf16[3,8,8], index: 1, kind: input, shape index: {}]
  %s2 = inlined_call_operand.vmem [shape: f32[8,1], index: 2, kind: input, shape index: {}]
  %s3 = inlined_call_operand.vmem [shape: f32[8,1], index: 3, kind: input, shape index: {}]
  %s4 = inlined_call_operand.vmem [shape: bf16[4,8,128], index: 4, kind: output, shape index: {0}]
  %s5 = inlined_call_operand.vmem [shape: f32[2,2,8], index: 5, kind: output, shape index: {1}]
  %6 = xla_tuple %s4, %s5
  %s7 = sld [smem:[#allocation0]]
  $region57: #{bottleneck_forward.5} parent=0
    _
  %s9 = ssub.s32 1, %s7
  %s10 = scalar_select 0, %s9, %s7
  loop: start=0, step=1, limit=4
  $region2: #{bottleneck_forward.5} parent=0 // loop_pre_header
    _
  $region3: #{bottleneck_forward.5} parent=0 // loop_header
    %s12 = sphi 0, %s16
    %p13 = scmp.ge.s32.totalorder %s12, 4
    %s22 = sphi 0, %s24
    %s25 = sphi 0, %s22
    %s26 = sphi 0, %s25
    %s42 = sphi 0, %s26
    %s46 = sphi 0, %s46
    %s48 = sphi 0, %s46
    %s49 = sphi 0, %s48
    %s63 = sphi 0, %s49
    %s67 = sphi 0, %s67
    %s69 = sphi 0, %s67
    %s70 = sphi 0, %s69
    %s84 = sphi 0, %s70
    %s88 = sphi 0, %s88
    %s90 = sphi 0, %s88
    %s91 = sphi 0, %s90
    %s105 = sphi 0, %s91
    %s111 = sphi 0, %s113
    %s114 = sphi 0, %s111
    %s115 = sphi 0, %s114
    %s131 = sphi 0, %s115
    %s137 = sphi 0, %s139
    %s140 = sphi 0, %s137
    %s141 = sphi 0, %s140
    %s157 = sphi 0, %s141
  $region4: #{bottleneck_forward.5} parent=0 // loop_header_branch
    %15 = sbr.rel (%p13) target = $region8
  $region5: #{bottleneck_forward.5} parent=0 // loop_body
    %s17 = ssub.s32 %s12, 1
    %s18 = ssub.s32 %s12, 2
    %s19 = sadd.s32 %s12, 1
    %s20 = ssub.s32 %s12, %s19
    %p21 = scmp.eq.s32.totalorder %s20, 0
    %s23 = sadd.s32 %s22, 1
    %s24 = scalar_select %p21, %s22, %s23
    %p27 = pneg %p21
    %p28 = scmp.eq.s32.totalorder %s12, 1
    %p29 = por %p27, %p28
    %p30 = scmp.ne.s32.totalorder %s22, %s25
    %p31 = scmp.eq.s32.totalorder %s12, 0
    %p32 = por %p30, %p31
    %p33 = scmp.ne.s32.totalorder %s22, %s25
    %p34 = scmp.eq.s32.totalorder %s17, 1
    %p35 = por %p33, %p34
    %p36 = scmp.ne.s32.totalorder %s25, %s26
    %p37 = scmp.eq.s32.totalorder %s17, 0
    %p38 = por %p36, %p37
    %p39 = scmp.ne.s32.totalorder %s25, %s26
    %p40 = scmp.eq.s32.totalorder %s18, 1
    %p41 = por %p39, %p40
    %p43 = scmp.ne.s32.totalorder %s26, %s42
    %p44 = scmp.eq.s32.totalorder %s18, 0
    %p45 = por %p43, %p44
    %s47 = sadd.s32 %s46, 1
    %p50 = scmp.eq.s32.totalorder %s12, 1
    %p51 = scmp.ne.s32.totalorder %s46, %s48
    %p52 = scmp.eq.s32.totalorder %s12, 0
    %p53 = por %p51, %p52
    %p54 = scmp.ne.s32.totalorder %s46, %s48
    %p55 = scmp.eq.s32.totalorder %s17, 1
    %p56 = por %p54, %p55
    %p57 = scmp.ne.s32.totalorder %s48, %s49
    %p58 = scmp.eq.s32.totalorder %s17, 0
    %p59 = por %p57, %p58
    %p60 = scmp.ne.s32.totalorder %s48, %s49
    %p61 = scmp.eq.s32.totalorder %s18, 1
    %p62 = por %p60, %p61
    %p64 = scmp.ne.s32.totalorder %s49, %s63
    %p65 = scmp.eq.s32.totalorder %s18, 0
    %p66 = por %p64, %p65
    %s68 = sadd.s32 %s67, 1
    %p71 = scmp.eq.s32.totalorder %s12, 1
    %p72 = scmp.ne.s32.totalorder %s67, %s69
    %p73 = scmp.eq.s32.totalorder %s12, 0
    %p74 = por %p72, %p73
    %p75 = scmp.ne.s32.totalorder %s67, %s69
    %p76 = scmp.eq.s32.totalorder %s17, 1
    %p77 = por %p75, %p76
    %p78 = scmp.ne.s32.totalorder %s69, %s70
    %p79 = scmp.eq.s32.totalorder %s17, 0
    %p80 = por %p78, %p79
    %p81 = scmp.ne.s32.totalorder %s69, %s70
    %p82 = scmp.eq.s32.totalorder %s18, 1
    %p83 = por %p81, %p82
    %p85 = scmp.ne.s32.totalorder %s70, %s84
    %p86 = scmp.eq.s32.totalorder %s18, 0
    %p87 = por %p85, %p86
    %s89 = sadd.s32 %s88, 1
    %p92 = scmp.eq.s32.totalorder %s12, 1
    %p93 = scmp.ne.s32.totalorder %s88, %s90
    %p94 = scmp.eq.s32.totalorder %s12, 0
    %p95 = por %p93, %p94
    %p96 = scmp.ne.s32.totalorder %s88, %s90
    %p97 = scmp.eq.s32.totalorder %s17, 1
    %p98 = por %p96, %p97
    %p99 = scmp.ne.s32.totalorder %s90, %s91
    %p100 = scmp.eq.s32.totalorder %s17, 0
    %p101 = por %p99, %p100
    %p102 = scmp.ne.s32.totalorder %s90, %s91
    %p103 = scmp.eq.s32.totalorder %s18, 1
    %p104 = por %p102, %p103
    %p106 = scmp.ne.s32.totalorder %s91, %s105
    %p107 = scmp.eq.s32.totalorder %s18, 0
    %p108 = por %p106, %p107
    %s109 = ssub.s32 %s12, %s19
    %p110 = scmp.eq.s32.totalorder %s109, 0
    %s112 = sadd.s32 %s111, 1
    %s113 = scalar_select %p110, %s111, %s112
    %p116 = pneg %p110
    %p117 = scmp.eq.s32.totalorder %s12, 1
    %p118 = por %p116, %p117
    %p119 = scmp.ne.s32.totalorder %s111, %s114
    %p120 = scmp.eq.s32.totalorder %s12, 0
    %p121 = por %p119, %p120
    %p122 = scmp.ne.s32.totalorder %s111, %s114
    %p123 = scmp.eq.s32.totalorder %s17, 1
    %p124 = por %p122, %p123
    %p125 = scmp.ne.s32.totalorder %s114, %s115
    %p126 = scmp.eq.s32.totalorder %s17, 0
    %p127 = por %p125, %p126
    %p128 = scmp.ne.s32.totalorder %s114, %s115
    %p129 = scmp.eq.s32.totalorder %s18, 1
    %p130 = por %p128, %p129
    %p132 = scmp.ne.s32.totalorder %s115, %s131
    %p133 = scmp.eq.s32.totalorder %s18, 0
    %p134 = por %p132, %p133
    %s135 = ssub.s32 %s12, %s19
    %p136 = scmp.eq.s32.totalorder %s135, 0
    %s138 = sadd.s32 %s137, 1
    %s139 = scalar_select %p136, %s137, %s138
    %p142 = pneg %p136
    %p143 = scmp.eq.s32.totalorder %s12, 1
    %p144 = por %p142, %p143
    %p145 = scmp.ne.s32.totalorder %s137, %s140
    %p146 = scmp.eq.s32.totalorder %s12, 0
    %p147 = por %p145, %p146
    %p148 = scmp.ne.s32.totalorder %s137, %s140
    %p149 = scmp.eq.s32.totalorder %s17, 1
    %p150 = por %p148, %p149
    %p151 = scmp.ne.s32.totalorder %s140, %s141
    %p152 = scmp.eq.s32.totalorder %s17, 0
    %p153 = por %p151, %p152
    %p154 = scmp.ne.s32.totalorder %s140, %s141
    %p155 = scmp.eq.s32.totalorder %s18, 1
    %p156 = por %p154, %p155
    %p158 = scmp.ne.s32.totalorder %s141, %s157
    %p159 = scmp.eq.s32.totalorder %s18, 0
    %p160 = por %p158, %p159
    %p161 = scmp.le.s32.totalorder 1, %s12
    %p162 = scmp.lt.s32.totalorder %s12, 3
    %p163 = pnand %p161, %p162
    %p164 = pneg %p163
    // Predicated region
    $region9: #{bottleneck_forward.5} parent=5 // pred_check
      _
    $region10: #{bottleneck_forward.5} parent=5 // pred_check_branch
      %166 = sbr.rel (%p163) target = $region12
    $region11: #{bottleneck_forward.5} parent=5 // pred_region
      %s167 = ssub.s32 %s12, 1
      // Predicated region
      $region13: #{bottleneck_forward.5} parent=11 // pred_check
        %p168 = pneg %p59
      $region14: #{bottleneck_forward.5} parent=11 // pred_check_branch
        %170 = sbr.rel (%p168) target = $region16
      $region15: #{bottleneck_forward.5} parent=11 // pred_region
        _
      $region16: #{bottleneck_forward.5} parent=11 // pred_fallthru
        _
      // Predicated region
      $region17: #{bottleneck_forward.5} parent=11 // pred_check
        %p171 = pneg %p80
      $region18: #{bottleneck_forward.5} parent=11 // pred_check_branch
        %173 = sbr.rel (%p171) target = $region20
      $region19: #{bottleneck_forward.5} parent=11 // pred_region
        _
      $region20: #{bottleneck_forward.5} parent=11 // pred_fallthru
        _
      // Predicated region
      $region21: #{bottleneck_forward.5} parent=11 // pred_check
        %p174 = pneg %p101
      $region22: #{bottleneck_forward.5} parent=11 // pred_check_branch
        %176 = sbr.rel (%p174) target = $region24
      $region23: #{bottleneck_forward.5} parent=11 // pred_region
        _
      $region24: #{bottleneck_forward.5} parent=11 // pred_fallthru
        _
    $region12: #{bottleneck_forward.5} parent=5 // pred_fallthru
      _
    %p177 = scmp.lt.s32.totalorder %s12, 2
    // Predicated region
    $region25: #{bottleneck_forward.5} parent=5 // pred_check
      %p178 = pneg %p177
    $region26: #{bottleneck_forward.5} parent=5 // pred_check_branch
      %180 = sbr.rel (%p178) target = $region28
    $region27: #{bottleneck_forward.5} parent=5 // pred_region
      // Predicated region
      $region29: #{bottleneck_forward.5} parent=27 // pred_check
        %p181 = pneg %p32
      $region30: #{bottleneck_forward.5} parent=27 // pred_check_branch
        %183 = sbr.rel (%p181) target = $region32
      $region31: #{bottleneck_forward.5} parent=27 // pred_region
        %s184 = smul.u32 2, %s12
        %p185 = scmp.lt.s32.totalorder %s184, 3
        %s186 = scalar_select %p185, %s184, 3
        %s187 = smul.addr %s186, 4
        %s188 = scalar_lea.vmem %s0, %s187
        %s189 = smul.u32 2, %s12
      $region32: #{bottleneck_forward.5} parent=27 // pred_fallthru
        _
    $region28: #{bottleneck_forward.5} parent=5 // pred_fallthru
      _
    %p190 = scmp.le.s32.totalorder 1, %s12
    %p191 = scmp.lt.s32.totalorder %s12, 3
    %p192 = pnand %p190, %p191
    %p193 = pneg %p192
    // Predicated region
    $region33: #{bottleneck_forward.5} parent=5 // pred_check
      _
    $region34: #{bottleneck_forward.5} parent=5 // pred_check_branch
      %195 = sbr.rel (%p192) target = $region36
    $region35: #{bottleneck_forward.5} parent=5 // pred_region
      %s196 = ssub.s32 %s12, 1
      %s197 = smul.u32 2, %s17
      %p198 = scmp.lt.s32.totalorder %s197, 3
      %s199 = scalar_select %p198, %s197, 3
      %s200 = smul.addr %s199, 4
      %s201 = scalar_lea.vmem %s0, %s200
      %p202 = pneg %p38
      %p203 = pneg %p35
      %p204 = pneg %p59
      %p205 = pneg %p56
      %p206 = pneg %p80
      %p207 = pneg %p77
      %p208 = pneg %p101
      %p209 = pneg %p98
      %p210 = pneg %p127
      %p211 = pneg %p124
      %s212 = smul.u32 2, %s17
      %p213 = scmp.lt.s32.totalorder %s212, 3
      %s214 = scalar_select %p213, %s212, 3
      %s215 = smul.addr %s214, 4
      %s216 = scalar_lea.vmem %s4, %s215
      %p217 = pneg %p153
      %p218 = pneg %p150
      %p219 = scmp.lt.s32.totalorder %s17, 1
      %s220 = scalar_select %p219, %s17, 1
      %s221 = smul.addr %s220, 2
      %s222 = scalar_lea.vmem %s5, %s221
      %s223 = smul.u32 2, %s17
      %p224 = scmp.lt.s32.totalorder %s223, 3
      %s225 = scalar_select %p224, %s223, 3
      %s226 = smul.addr %s225, 4
      %s227 = scalar_lea.vmem %s0, %s226
      %s228 = smul.u32 2, %s17
      %s229 = smul.u32 2, %s17
      %p230 = scmp.lt.s32.totalorder %s229, 3
      %s231 = scalar_select %p230, %s229, 3
      %s232 = smul.addr %s231, 4
      %s233 = scalar_lea.vmem %s4, %s232
      %s234 = smul.u32 2, %s17
      %p235 = scmp.lt.s32.totalorder %s17, 1
      %s236 = scalar_select %p235, %s17, 1
      %s237 = smul.addr %s236, 2
      %s238 = scalar_lea.vmem %s5, %s237
      %v240 = vld [vmem:[%s2] sm:$0xff]
      %v241 = vld [vmem:[%s3] sm:$0xff]
      %v242 = vld [vmem:[%s1] sm:$0xf]
      %s243 = scalar_lea.vmem %s1, 4
      %v244 = vld [vmem:[%s243] sm:$0xf]
      %s245 = scalar_lea.vmem %s1, 8
      %v246 = vld [vmem:[%s245] sm:$0xf]
      %v247 = vld [vmem:[%s227] sm:$0xf]
      %v248 = vunpack.c.l.bf16 %v247
      %250 = vset.pattern.permute.xlu0 0
      %251 = vperm.xlu0 %250, %v240
      %v252 = vpop.permute.xlu0 %251
      %v254 = vmul.f32 %v248, %v252
      %256 = vset.pattern.permute.xlu0 0
      %257 = vperm.xlu0 %256, %v241
      %v258 = vpop.permute.xlu0 %257
      %v260 = vadd.f32 %v254, %v258
      %v261 = vmax.f32 %v260, 0.0
      %v262 = vlaneseq
      %v263 = vand.u32 %v262, 127
      %vm264 = vcmp.eq.s32.totalorder %v263, 0
      %265 = vrot.lane.b32.xlu0 %v261, 1
      %v266 = vpop.permute.xlu0 %265
      %v267 = vsel %vm264, 0.0, %v266
      %vm268 = vcmp.eq.s32.totalorder %v263, 127
      %269 = vrot.lane.b32.xlu0 %v261, 127
      %v270 = vpop.permute.xlu0 %269
      %v271 = vsel %vm268, 0.0, %v270
      %v272 = vpack.c.bf16 %v267, %v267
      %v273 = vpack.c.bf16 %v261, %v261
      %vm274 = vcmask 64512
      %v276 = vsel %vm274, %v244, 0
      %vm278 = vcmask 1043456
      %v280 = vsel %vm278, %v273, 0
      %282 = vmatpush.bf16.msra.mxu0 0
      %283 = vmatpush.bf16.msra.mxu0 0
      %284 = vmatpush.bf16.msra.mxu0 0
      %285 = vmatpush.bf16.msra.mxu0 0
      %286 = vmatpush.bf16.msra.mxu0 0
      %287 = vmatpush.bf16.msra.mxu0 0
      %288 = vmatpush.bf16.msra.mxu0 0
      %289 = vmatpush.bf16.msra.mxu0 %v280
      %290 = vmatmul.bf16.gmra.mxu0 %v276
      %v291 = vpop.f32.mrf.mxu0
      %v292 = vadd.f32 0.0, %v291
      %v293 = vpop.f32.mrf.mxu0
      %294 = vdwg.mxu0
      %v296 = vsel %vm274, %v242, 0
      %v299 = vsel %vm278, %v272, 0
      %301 = vmatpush.bf16.msra.mxu0 0
      %302 = vmatpush.bf16.msra.mxu0 0
      %303 = vmatpush.bf16.msra.mxu0 0
      %304 = vmatpush.bf16.msra.mxu0 0
      %305 = vmatpush.bf16.msra.mxu0 0
      %306 = vmatpush.bf16.msra.mxu0 0
      %307 = vmatpush.bf16.msra.mxu0 0
      %308 = vmatpush.bf16.msra.mxu0 %v299
      %309 = vmatmul.bf16.gmra.mxu0 %v296
      %v310 = vpop.f32.mrf.mxu0
      %v311 = vadd.f32 %v292, %v310
      %v312 = vpop.f32.mrf.mxu0
      %313 = vdwg.mxu0
      %v314 = vpack.c.bf16 %v271, %v271
      %v316 = vsel %vm274, %v246, 0
      %v319 = vsel %vm278, %v314, 0
      %321 = vmatpush.bf16.msra.mxu0 0
      %322 = vmatpush.bf16.msra.mxu0 0
      %323 = vmatpush.bf16.msra.mxu0 0
      %324 = vmatpush.bf16.msra.mxu0 0
      %325 = vmatpush.bf16.msra.mxu0 0
      %326 = vmatpush.bf16.msra.mxu0 0
      %327 = vmatpush.bf16.msra.mxu0 0
      %328 = vmatpush.bf16.msra.mxu0 %v319
      %329 = vmatmul.bf16.gmra.mxu0 %v316
      %v330 = vpop.f32.mrf.mxu0
      %v331 = vadd.f32 0.0, %v330
      %v332 = vpop.f32.mrf.mxu0
      %333 = vdwg.mxu0
      %v334 = vadd.f32 %v311, %v331
      %v335 = vpack.c.bf16 %v334, %v334
      %336 = vst [vmem:[%s233] sm:$0xf] %v335
      %v337 = vmul.f32 %v334, %v334
      %s338 = scalar_lea.vmem %s227, 4
      %v339 = vld [vmem:[%s338] sm:$0xf]
      %v340 = vunpack.c.l.bf16 %v339
      %v341 = vmul.f32 %v340, %v252
      %v342 = vadd.f32 %v341, %v258
      %v343 = vmax.f32 %v342, 0.0
      %344 = vrot.lane.b32.xlu0 %v343, 1
      %v345 = vpop.permute.xlu0 %344
      %v346 = vsel %vm264, 0.0, %v345
      %347 = vrot.lane.b32.xlu0 %v343, 127
      %v348 = vpop.permute.xlu0 %347
      %v349 = vsel %vm268, 0.0, %v348
      %v350 = vpack.c.bf16 %v346, %v346
      %v351 = vpack.c.bf16 %v343, %v343
      %v353 = vsel %vm278, %v351, 0
      %355 = vmatpush.bf16.msra.mxu0 0
      %356 = vmatpush.bf16.msra.mxu0 0
      %357 = vmatpush.bf16.msra.mxu0 0
      %358 = vmatpush.bf16.msra.mxu0 0
      %359 = vmatpush.bf16.msra.mxu0 0
      %360 = vmatpush.bf16.msra.mxu0 0
      %361 = vmatpush.bf16.msra.mxu0 0
      %362 = vmatpush.bf16.msra.mxu0 %v353
      %363 = vmatmul.bf16.gmra.mxu0 %v276
      %v364 = vpop.f32.mrf.mxu0
      %v365 = vadd.f32 0.0, %v364
      %v366 = vpop.f32.mrf.mxu0
      %367 = vdwg.mxu0
      %v369 = vsel %vm278, %v350, 0
      %371 = vmatpush.bf16.msra.mxu0 0
      %372 = vmatpush.bf16.msra.mxu0 0
      %373 = vmatpush.bf16.msra.mxu0 0
      %374 = vmatpush.bf16.msra.mxu0 0
      %375 = vmatpush.bf16.msra.mxu0 0
      %376 = vmatpush.bf16.msra.mxu0 0
      %377 = vmatpush.bf16.msra.mxu0 0
      %378 = vmatpush.bf16.msra.mxu0 %v369
      %379 = vmatmul.bf16.gmra.mxu0 %v296
      %v380 = vpop.f32.mrf.mxu0
      %v381 = vadd.f32 %v365, %v380
      %v382 = vpop.f32.mrf.mxu0
      %383 = vdwg.mxu0
      %v384 = vpack.c.bf16 %v349, %v349
      %v386 = vsel %vm278, %v384, 0
      %388 = vmatpush.bf16.msra.mxu0 0
      %389 = vmatpush.bf16.msra.mxu0 0
      %390 = vmatpush.bf16.msra.mxu0 0
      %391 = vmatpush.bf16.msra.mxu0 0
      %392 = vmatpush.bf16.msra.mxu0 0
      %393 = vmatpush.bf16.msra.mxu0 0
      %394 = vmatpush.bf16.msra.mxu0 0
      %395 = vmatpush.bf16.msra.mxu0 %v386
      %396 = vmatmul.bf16.gmra.mxu0 %v316
      %v397 = vpop.f32.mrf.mxu0
      %v398 = vadd.f32 0.0, %v397
      %v399 = vpop.f32.mrf.mxu0
      %400 = vdwg.mxu0
      %v401 = vadd.f32 %v381, %v398
      %v402 = vpack.c.bf16 %v401, %v401
      %s403 = scalar_lea.vmem %s233, 4
      %404 = vst [vmem:[%s403] sm:$0xf] %v402
      %v405 = vadd.f32 %v334, %v401
      %v406 = vmul.f32 %v401, %v401
      %v407 = vadd.f32 %v337, %v406
      %408 = vmatpush.xpose.msra.mxu0 0.0
      %409 = vmatpush.xpose.msra.mxu0 0.0
      %410 = vmatpush.xpose.msra.mxu0 0.0
      %411 = vmatpush.xpose.msra.mxu0 0.0
      %412 = vmatpush.xpose.msra.mxu0 0.0
      %413 = vmatpush.xpose.msra.mxu0 0.0
      %414 = vmatpush.xpose.msra.mxu0 0.0
      %415 = vmatpush.xpose.msra.mxu0 0.0
      %416 = vmatpush.xpose.msra.mxu0 0.0
      %417 = vmatpush.xpose.msra.mxu0 0.0
      %418 = vmatpush.xpose.msra.mxu0 0.0
      %419 = vmatpush.xpose.msra.mxu0 0.0
      %420 = vmatpush.xpose.msra.mxu0 0.0
      %421 = vmatpush.xpose.msra.mxu0 0.0
      %422 = vmatpush.xpose.msra.mxu0 0.0
      %423 = vmatpush.xpose.msra.mxu0 %v405
      %424 = vmatmul.f32.gmra.mxu0 1.0
      %v425 = vpop.f32.mrf.mxu0
      %v426 = vadd.f32 0.0, %v425
      %427 = vdwg.mxu0
      %428 = vmatpush.xpose.msra.mxu0 0.0
      %429 = vmatpush.xpose.msra.mxu0 0.0
      %430 = vmatpush.xpose.msra.mxu0 0.0
      %431 = vmatpush.xpose.msra.mxu0 0.0
      %432 = vmatpush.xpose.msra.mxu0 0.0
      %433 = vmatpush.xpose.msra.mxu0 0.0
      %434 = vmatpush.xpose.msra.mxu0 0.0
      %435 = vmatpush.xpose.msra.mxu0 0.0
      %436 = vmatpush.xpose.msra.mxu0 0.0
      %437 = vmatpush.xpose.msra.mxu0 0.0
      %438 = vmatpush.xpose.msra.mxu0 0.0
      %439 = vmatpush.xpose.msra.mxu0 0.0
      %440 = vmatpush.xpose.msra.mxu0 0.0
      %441 = vmatpush.xpose.msra.mxu0 0.0
      %442 = vmatpush.xpose.msra.mxu0 0.0
      %443 = vmatpush.xpose.msra.mxu0 %v407
      %444 = vmatmul.f32.gmra.mxu0 1.0
      %v445 = vpop.f32.mrf.mxu0
      %v446 = vadd.f32 0.0, %v445
      %447 = vdwg.mxu0
      %v449 = vrot.slane %v446, 7
      %vm451 = vcmask 1040384
      %v452 = vsel %vm451, %v426, %v449
      %vm453 = vcmask 58368
      %454 = vst.msk [vmem:[%s238] sm:$0x3] %vm453, %v452
      %s455 = smul.u32 2, %s17
      %p456 = scmp.lt.s32.totalorder %s455, 3
      %s457 = scalar_select %p456, %s455, 3
      %s458 = smul.addr %s457, 4
      %s459 = scalar_lea.vmem %s4, %s458
      %p460 = scmp.lt.s32.totalorder %s17, 1
      %s461 = scalar_select %p460, %s17, 1
      %s462 = smul.addr %s461, 2
      %s463 = scalar_lea.vmem %s5, %s462
      // Predicated region
      $region37: #{bottleneck_forward.5} parent=35 // pred_check
        %p464 = pneg %p124
      $region38: #{bottleneck_forward.5} parent=35 // pred_check_branch
        %466 = sbr.rel (%p464) target = $region40
      $region39: #{bottleneck_forward.5} parent=35 // pred_region
        %s467 = smul.u32 2, %s17
      $region40: #{bottleneck_forward.5} parent=35 // pred_fallthru
        _
      // Predicated region
      $region41: #{bottleneck_forward.5} parent=35 // pred_check
        %p468 = pneg %p150
      $region42: #{bottleneck_forward.5} parent=35 // pred_check_branch
        %470 = sbr.rel (%p468) target = $region44
      $region43: #{bottleneck_forward.5} parent=35 // pred_region
        _
      $region44: #{bottleneck_forward.5} parent=35 // pred_fallthru
        _
    $region36: #{bottleneck_forward.5} parent=5 // pred_fallthru
      _
    %p471 = scmp.le.s32.totalorder 2, %s12
    // Predicated region
    $region45: #{bottleneck_forward.5} parent=5 // pred_check
      %p472 = pneg %p471
    $region46: #{bottleneck_forward.5} parent=5 // pred_check_branch
      %474 = sbr.rel (%p472) target = $region48
    $region47: #{bottleneck_forward.5} parent=5 // pred_region
      %s475 = ssub.s32 %s12, 2
      // Predicated region
      $region49: #{bottleneck_forward.5} parent=47 // pred_check
        %p476 = pneg %p130
      $region50: #{bottleneck_forward.5} parent=47 // pred_check_branch
        %478 = sbr.rel (%p476) target = $region52
      $region51: #{bottleneck_forward.5} parent=47 // pred_region
        %s479 = smul.u32 2, %s18
        %p480 = scmp.lt.s32.totalorder %s479, 3
        %s481 = scalar_select %p480, %s479, 3
        %s482 = smul.addr %s481, 4
        %s483 = scalar_lea.vmem %s4, %s482
      $region52: #{bottleneck_forward.5} parent=47 // pred_fallthru
        _
      // Predicated region
      $region53: #{bottleneck_forward.5} parent=47 // pred_check
        %p484 = pneg %p156
      $region54: #{bottleneck_forward.5} parent=47 // pred_check_branch
        %486 = sbr.rel (%p484) target = $region56
      $region55: #{bottleneck_forward.5} parent=47 // pred_region
        %p487 = scmp.lt.s32.totalorder %s18, 1
        %s488 = scalar_select %p487, %s18, 1
        %s489 = smul.addr %s488, 2
        %s490 = scalar_lea.vmem %s5, %s489
      $region56: #{bottleneck_forward.5} parent=47 // pred_fallthru
        _
    $region48: #{bottleneck_forward.5} parent=5 // pred_fallthru
      _
  $region6: #{bottleneck_forward.5} parent=0 // loop_footer
    %s16 = sadd.s32 1, %s12
  $region7: #{bottleneck_forward.5} parent=0 // loop_footer_branch
    %11 = sbr.rel target = $region3
  $region8: #{bottleneck_forward.5} parent=0 // loop_exit
    _

</llo_original>
